<compile_context>
chip_gen: v5e
topology: v5e:2x2
jax: 0.10.0
libtpu: 0.0.40
codegen_flags: <defaults>
</compile_context>

<pallas_src>
import jax
import jax.numpy as jnp
from jax.experimental import pallas as pl
from jax.experimental.pallas import tpu as pltpu

_LANE = 128
_SUBLANE = 8
_BLOCK_BUDGET_BYTES = 32 << 20   # total live block working set, all generations
_VMEM_LIMIT_CAP = 48 << 20       # stays under v7x's 64 MiB/TC physical VMEM


def _affine_kernel(xa_ref, xb_ref, sa_ref, ba_ref, sb_ref, bb_ref,
                   oa_ref, ob_ref):
    """out = x * scale + bias for both channel halves (one FMA per element)."""
    xa = xa_ref[...].astype(jnp.float32)
    xb = xb_ref[...].astype(jnp.float32)
    oa_ref[...] = (xa * sa_ref[...] + ba_ref[...]).astype(oa_ref.dtype)
    ob_ref[...] = (xb * sb_ref[...] + bb_ref[...]).astype(ob_ref.dtype)


def _working_set_bytes(tb, tl, act_itemsize, param_bufs=2):
    """VMEM footprint of one pipelined step's blocks."""
    # xa, xb, oa, ob: double-buffered activation blocks.
    act = 2 * 4 * tb * tl * act_itemsize
    # scale/bias for each half, f32, (1, tl) blocks pad to 8 sublanes.
    par = param_bufs * 4 * _SUBLANE * tl * 4
    return act + par


def _choose_tiles(n, d, itemsize):
    """Pick (batch_tile, lane_tile) for a (n, d) elementwise affine."""
    # Batch-tile candidates: sublane-aligned divisors of n, plus full n
    # (full-dim blocks are always layout-legal even when n < 8).
    tb_cands = {n}
    for k in range(1, int(n ** 0.5) + 1):
        if n % k == 0:
            for t in (k, n // k):
                if t % _SUBLANE == 0:
                    tb_cands.add(t)
    # Lane-tile candidates: multiples of 128 dividing d, plus full d.
    tl_cands = {d}
    if d % _LANE == 0:
        q = d // _LANE
        for k in range(1, int(q ** 0.5) + 1):
            if q % k == 0:
                tl_cands.add(k * _LANE)
                tl_cands.add((q // k) * _LANE)

    pairs = [(tb, tl) for tb in tb_cands for tl in tl_cands]
    feasible = [p for p in pairs
                if _working_set_bytes(p[0], p[1], itemsize) <= _BLOCK_BUDGET_BYTES]
    if feasible:
        return max(feasible, key=lambda p: (
            (n // p[0]) * (d // p[1]) >= 2,   # >=2 grid steps so dual TCs can split
            p[0] * p[1] * itemsize,           # then the biggest block (amortize step overhead)
            p[1],                             # then the widest lanes (dense stores, fewer param fetches)
        ))
    # TODO(synk): truly huge rows that are not 128-divisible would need
    #             element-level lane padding; fall back to the smallest blocks.
    return min(pairs, key=lambda p: _working_set_bytes(p[0], p[1], itemsize))


def _run_affine_kernel(xa, xb, sa, ba, sb, bb):
    n, d = xa.shape
    itemsize = xa.dtype.itemsize
    tb, tl = _choose_tiles(n, d, itemsize)
    ws = _working_set_bytes(tb, tl, itemsize)
    vmem_limit = int(min(_VMEM_LIMIT_CAP, max(2 * ws + (16 << 20), 32 << 20)))
    grid = (n // tb, d // tl)

    x_spec = pl.BlockSpec((tb, tl), lambda i, j: (i, j))
    cost = pl.CostEstimate(
        flops=4 * n * d,                                   # mul + add, two halves
        transcendentals=0,
        bytes_accessed=4 * n * d * itemsize + 4 * d * 4,   # 2 reads + 2 writes + params
    )

    def build(single_buffer_params):
        if single_buffer_params:
            # Constant-ish params: no need for 2-deep buffering, reclaim VMEM.
            p_spec = pl.BlockSpec((1, tl), lambda i, j: (0, j),
                                  pipeline_mode=pl.Buffered(1))
        else:
            p_spec = pl.BlockSpec((1, tl), lambda i, j: (0, j))
        return pl.pallas_call(
            _affine_kernel,
            out_shape=(jax.ShapeDtypeStruct((n, d), xa.dtype),
                       jax.ShapeDtypeStruct((n, d), xb.dtype)),
            grid_spec=pltpu.PrefetchScalarGridSpec(
                num_scalar_prefetch=0,
                grid=grid,
                in_specs=[x_spec, x_spec, p_spec, p_spec, p_spec, p_spec],
                out_specs=[x_spec, x_spec],
            ),
            compiler_params=pltpu.CompilerParams(
                dimension_semantics=("parallel", "parallel"),
                vmem_limit_bytes=vmem_limit,
            ),
            cost_estimate=cost,
        )

    args = (xa, xb, sa, ba, sb, bb)
    try:
        return build(True)(*args)
    except Exception:
        # Fallback if this JAX build rejects single-buffered pipeline_mode.
        return build(False)(*args)


class BaseNormPallas:
    """JAX/Pallas re-implementation of _BaseNorm's forward pass."""

    def __init__(self, num_channels, height, width, key):
        num_channels *= 2
        self.num_channels = num_channels
        self.height = height
        self.width = width
        self.eps = 1e-6
        k_mean, k_std = jax.random.split(key)
        # TODO(synk): _get_moments (data-dependent first-batch init) is abstract
        #             in _BaseNorm; parameters are initialized deterministically
        #             here and is_initialized is treated as already set.
        self.mean = 0.1 * jax.random.normal(
            k_mean, (1, num_channels, height, width), dtype=jnp.float32)
        # inv_std must be positive for log().
        self.inv_std = jnp.exp(
            0.1 * jax.random.normal(
                k_std, (1, num_channels, height, width), dtype=jnp.float32))
        self.is_initialized = jnp.ones((1,), dtype=jnp.float32)

    def __call__(self, x, ldj=None, reverse=False):
        # x is a tuple of two NCHW tensors; torch.cat(dim=1)/chunk(2, dim=1) is
        # handled by operating on the two halves directly (no HBM concat).
        x_a, x_b = x
        n, c, h, w = x_a.shape
        assert 2 * c == self.num_channels and h == self.height and w == self.width
        assert x_b.shape == x_a.shape
        if ldj is None:
            ldj = jnp.zeros((n,), dtype=jnp.float32)

        d = c * h * w
        mean_a = self.mean[:, :c].reshape(1, d)
        mean_b = self.mean[:, c:].reshape(1, d)
        inv_a = self.inv_std[:, :c].reshape(1, d)
        inv_b = self.inv_std[:, c:].reshape(1, d)

        # Constant log-det term: computed once on the parameters (plain JAX),
        # never recomputed per grid step inside the kernel.
        sldj_delta = jnp.sum(jnp.log(self.inv_std))

        if reverse:
            # out = x * (1/inv_std) + mean  (reciprocal hoisted to the wrapper).
            scale_a, scale_b = 1.0 / inv_a, 1.0 / inv_b
            bias_a, bias_b = mean_a, mean_b
            ldj_out = ldj - sldj_delta
        else:
            # out = (x - mean) * inv_std == x * inv_std + (-mean * inv_std).
            scale_a, scale_b = inv_a, inv_b
            bias_a, bias_b = -mean_a * inv_a, -mean_b * inv_b
            ldj_out = ldj + sldj_delta

        out_a, out_b = _run_affine_kernel(
            x_a.reshape(n, d), x_b.reshape(n, d),
            scale_a, bias_a, scale_b, bias_b)
        return (out_a.reshape(n, c, h, w), out_b.reshape(n, c, h, w)), ldj_out


def _reference_forward(module, x, ldj, reverse=False):
    x_cat = jnp.concatenate(x, axis=1)
    if reverse:
        x_cat = x_cat / module.inv_std
        ldj = ldj - jnp.sum(jnp.log(module.inv_std))
        x_cat = x_cat + module.mean
    else:
        x_cat = x_cat - module.mean
        x_cat = x_cat * module.inv_std
        ldj = ldj + jnp.sum(jnp.log(module.inv_std))
    return jnp.split(x_cat, 2, axis=1), ldj


if __name__ == "__main__":
    key = jax.random.PRNGKey(0)
    k_param, k_a, k_b = jax.random.split(key, 3)

    N, C, H, W = 2, 4, 16, 16
    module = BaseNormPallas(num_channels=C, height=H, width=W, key=k_param)

    x_a = jax.random.normal(k_a, (N, C, H, W), dtype=jnp.float32)
    x_b = jax.random.normal(k_b, (N, C, H, W), dtype=jnp.float32)
    ldj = jnp.zeros((N,), dtype=jnp.float32)

    # Forward
    (ya, yb), ldj_out = module((x_a, x_b), ldj, reverse=False)
    jax.block_until_ready((ya, yb, ldj_out))
    (ra, rb), ldj_ref = _reference_forward(module, (x_a, x_b), ldj, reverse=False)
    assert jnp.allclose(ya, ra, atol=1e-5, rtol=1e-5)
    assert jnp.allclose(yb, rb, atol=1e-5, rtol=1e-5)
    assert jnp.allclose(ldj_out, ldj_ref, atol=1e-4, rtol=1e-5)

    # Reverse
    (za, zb), ldj_rev = module((ya, yb), ldj_out, reverse=True)
    jax.block_until_ready((za, zb, ldj_rev))
    (qa, qb), ldj_rev_ref = _reference_forward(module, (ya, yb), ldj_out, reverse=True)
    assert jnp.allclose(za, qa, atol=1e-5, rtol=1e-5)
    assert jnp.allclose(zb, qb, atol=1e-5, rtol=1e-5)
    assert jnp.allclose(ldj_rev, ldj_rev_ref, atol=1e-4, rtol=1e-5)
    # Invertibility sanity check.
    assert jnp.allclose(za, x_a, atol=1e-4, rtol=1e-4)
    assert jnp.allclose(zb, x_b, atol=1e-4, rtol=1e-4)

    print("KERNEL_OK")
</pallas_src>

<mosaic_0001>
module attributes {stable_mosaic.version = 11 : i64} {
  func.func @_affine_kernel(%arg0: i32, %arg1: i32, %arg2: memref<2x512xf32, #tpu.memory_space<vmem>>, %arg3: memref<2x512xf32, #tpu.memory_space<vmem>>, %arg4: memref<1x512xf32, #tpu.memory_space<vmem>>, %arg5: memref<1x512xf32, #tpu.memory_space<vmem>>, %arg6: memref<1x512xf32, #tpu.memory_space<vmem>>, %arg7: memref<1x512xf32, #tpu.memory_space<vmem>>, %arg8: memref<2x512xf32, #tpu.memory_space<vmem>>, %arg9: memref<2x512xf32, #tpu.memory_space<vmem>>) attributes {dimension_semantics = [#tpu.dimension_semantics<parallel>, #tpu.dimension_semantics<parallel>], iteration_bounds = array<i64: 1, 2>, scalar_prefetch = 0 : i64, scratch_operands = 0 : i64, tpu.core_type = #tpu.core_type<tc>, window_params = [{transform_indices = @transform_0, window_bounds = array<i64: 2, 512>}, {transform_indices = @transform_1, window_bounds = array<i64: 2, 512>}, {pipeline_mode = #tpu.pipeline_mode<synchronous>, transform_indices = @transform_2, window_bounds = array<i64: 1, 512>}, {pipeline_mode = #tpu.pipeline_mode<synchronous>, transform_indices = @transform_3, window_bounds = array<i64: 1, 512>}, {pipeline_mode = #tpu.pipeline_mode<synchronous>, transform_indices = @transform_4, window_bounds = array<i64: 1, 512>}, {pipeline_mode = #tpu.pipeline_mode<synchronous>, transform_indices = @transform_5, window_bounds = array<i64: 1, 512>}, {transform_indices = @transform_6, window_bounds = array<i64: 2, 512>}, {transform_indices = @transform_7, window_bounds = array<i64: 2, 512>}]} {
    %c0 = arith.constant 0 : index
    %c0_0 = arith.constant 0 : index
    %0 = vector.load %arg2[%c0, %c0_0] : memref<2x512xf32, #tpu.memory_space<vmem>>, vector<2x512xf32>
    %c0_1 = arith.constant 0 : index
    %c0_2 = arith.constant 0 : index
    %1 = vector.load %arg3[%c0_1, %c0_2] : memref<2x512xf32, #tpu.memory_space<vmem>>, vector<2x512xf32>
    %c0_3 = arith.constant 0 : index
    %c0_4 = arith.constant 0 : index
    %2 = vector.load %arg4[%c0_3, %c0_4] : memref<1x512xf32, #tpu.memory_space<vmem>>, vector<1x512xf32>
    %3 = vector.broadcast %2 : vector<1x512xf32> to vector<2x512xf32>
    %4 = arith.mulf %0, %3 : vector<2x512xf32>
    %c0_5 = arith.constant 0 : index
    %c0_6 = arith.constant 0 : index
    %5 = vector.load %arg5[%c0_5, %c0_6] : memref<1x512xf32, #tpu.memory_space<vmem>>, vector<1x512xf32>
    %6 = vector.broadcast %5 : vector<1x512xf32> to vector<2x512xf32>
    %7 = arith.addf %4, %6 : vector<2x512xf32>
    %c0_7 = arith.constant 0 : index
    %c0_8 = arith.constant 0 : index
    %8 = vector.load %arg8[%c0_7, %c0_8] : memref<2x512xf32, #tpu.memory_space<vmem>>, vector<2x512xf32>
    tpu.vector_store %arg8[%c0_7, %c0_8], %7 {strides = array<i32>} : memref<2x512xf32, #tpu.memory_space<vmem>>, vector<2x512xf32>,
    %c0_9 = arith.constant 0 : index
    %c0_10 = arith.constant 0 : index
    %9 = vector.load %arg6[%c0_9, %c0_10] : memref<1x512xf32, #tpu.memory_space<vmem>>, vector<1x512xf32>
    %10 = vector.broadcast %9 : vector<1x512xf32> to vector<2x512xf32>
    %11 = arith.mulf %1, %10 : vector<2x512xf32>
    %c0_11 = arith.constant 0 : index
    %c0_12 = arith.constant 0 : index
    %12 = vector.load %arg7[%c0_11, %c0_12] : memref<1x512xf32, #tpu.memory_space<vmem>>, vector<1x512xf32>
    %13 = vector.broadcast %12 : vector<1x512xf32> to vector<2x512xf32>
    %14 = arith.addf %11, %13 : vector<2x512xf32>
    %c0_13 = arith.constant 0 : index
    %c0_14 = arith.constant 0 : index
    %15 = vector.load %arg9[%c0_13, %c0_14] : memref<2x512xf32, #tpu.memory_space<vmem>>, vector<2x512xf32>
    tpu.vector_store %arg9[%c0_13, %c0_14], %14 {strides = array<i32>} : memref<2x512xf32, #tpu.memory_space<vmem>>, vector<2x512xf32>,
    return
  }
  func.func @transform_0(%arg0: i32, %arg1: i32) -> (i32, i32) {
    %c0_i32 = arith.constant 0 : i32
    return %arg0, %arg1 : i32, i32
  }
  func.func @transform_1(%arg0: i32, %arg1: i32) -> (i32, i32) {
    %c0_i32 = arith.constant 0 : i32
    return %arg0, %arg1 : i32, i32
  }
  func.func @transform_2(%arg0: i32, %arg1: i32) -> (i32, i32) {
    %c0_i32 = arith.constant 0 : i32
    %c0_i32_0 = arith.constant 0 : i32
    return %c0_i32, %arg1 : i32, i32
  }
  func.func @transform_3(%arg0: i32, %arg1: i32) -> (i32, i32) {
    %c0_i32 = arith.constant 0 : i32
    %c0_i32_0 = arith.constant 0 : i32
    return %c0_i32, %arg1 : i32, i32
  }
  func.func @transform_4(%arg0: i32, %arg1: i32) -> (i32, i32) {
    %c0_i32 = arith.constant 0 : i32
    %c0_i32_0 = arith.constant 0 : i32
    return %c0_i32, %arg1 : i32, i32
  }
  func.func @transform_5(%arg0: i32, %arg1: i32) -> (i32, i32) {
    %c0_i32 = arith.constant 0 : i32
    %c0_i32_0 = arith.constant 0 : i32
    return %c0_i32, %arg1 : i32, i32
  }
  func.func @transform_6(%arg0: i32, %arg1: i32) -> (i32, i32) {
    %c0_i32 = arith.constant 0 : i32
    return %arg0, %arg1 : i32, i32
  }
  func.func @transform_7(%arg0: i32, %arg1: i32) -> (i32, i32) {
    %c0_i32 = arith.constant 0 : i32
    return %arg0, %arg1 : i32, i32
  }
}

module attributes {stable_mosaic.version = 11 : i64} {
  func.func @_affine_kernel(%arg0: i32, %arg1: i32, %arg2: memref<2x512xf32, #tpu.memory_space<vmem>>, %arg3: memref<2x512xf32, #tpu.memory_space<vmem>>, %arg4: memref<1x512xf32, #tpu.memory_space<vmem>>, %arg5: memref<1x512xf32, #tpu.memory_space<vmem>>, %arg6: memref<1x512xf32, #tpu.memory_space<vmem>>, %arg7: memref<1x512xf32, #tpu.memory_space<vmem>>, %arg8: memref<2x512xf32, #tpu.memory_space<vmem>>, %arg9: memref<2x512xf32, #tpu.memory_space<vmem>>) attributes {dimension_semantics = [#tpu.dimension_semantics<parallel>, #tpu.dimension_semantics<parallel>], iteration_bounds = array<i64: 1, 2>, scalar_prefetch = 0 : i64, scratch_operands = 0 : i64, tpu.core_type = #tpu.core_type<tc>, window_params = [{transform_indices = @transform_0, window_bounds = array<i64: 2, 512>}, {transform_indices = @transform_1, window_bounds = array<i64: 2, 512>}, {transform_indices = @transform_2, window_bounds = array<i64: 1, 512>}, {transform_indices = @transform_3, window_bounds = array<i64: 1, 512>}, {transform_indices = @transform_4, window_bounds = array<i64: 1, 512>}, {transform_indices = @transform_5, window_bounds = array<i64: 1, 512>}, {transform_indices = @transform_6, window_bounds = array<i64: 2, 512>}, {transform_indices = @transform_7, window_bounds = array<i64: 2, 512>}]} {
    %c0 = arith.constant 0 : index
    %c0_0 = arith.constant 0 : index
    %0 = vector.load %arg2[%c0, %c0_0] : memref<2x512xf32, #tpu.memory_space<vmem>>, vector<2x512xf32>
    %c0_1 = arith.constant 0 : index
    %c0_2 = arith.constant 0 : index
    %1 = vector.load %arg3[%c0_1, %c0_2] : memref<2x512xf32, #tpu.memory_space<vmem>>, vector<2x512xf32>
    %c0_3 = arith.constant 0 : index
    %c0_4 = arith.constant 0 : index
    %2 = vector.load %arg4[%c0_3, %c0_4] : memref<1x512xf32, #tpu.memory_space<vmem>>, vector<1x512xf32>
    %3 = vector.broadcast %2 : vector<1x512xf32> to vector<2x512xf32>
    %4 = arith.mulf %0, %3 : vector<2x512xf32>
    %c0_5 = arith.constant 0 : index
    %c0_6 = arith.constant 0 : index
    %5 = vector.load %arg5[%c0_5, %c0_6] : memref<1x512xf32, #tpu.memory_space<vmem>>, vector<1x512xf32>
    %6 = vector.broadcast %5 : vector<1x512xf32> to vector<2x512xf32>
    %7 = arith.addf %4, %6 : vector<2x512xf32>
    %c0_7 = arith.constant 0 : index
    %c0_8 = arith.constant 0 : index
    %8 = vector.load %arg8[%c0_7, %c0_8] : memref<2x512xf32, #tpu.memory_space<vmem>>, vector<2x512xf32>
    tpu.vector_store %arg8[%c0_7, %c0_8], %7 {strides = array<i32>} : memref<2x512xf32, #tpu.memory_space<vmem>>, vector<2x512xf32>,
    %c0_9 = arith.constant 0 : index
    %c0_10 = arith.constant 0 : index
    %9 = vector.load %arg6[%c0_9, %c0_10] : memref<1x512xf32, #tpu.memory_space<vmem>>, vector<1x512xf32>
    %10 = vector.broadcast %9 : vector<1x512xf32> to vector<2x512xf32>
    %11 = arith.mulf %1, %10 : vector<2x512xf32>
    %c0_11 = arith.constant 0 : index
    %c0_12 = arith.constant 0 : index
    %12 = vector.load %arg7[%c0_11, %c0_12] : memref<1x512xf32, #tpu.memory_space<vmem>>, vector<1x512xf32>
    %13 = vector.broadcast %12 : vector<1x512xf32> to vector<2x512xf32>
    %14 = arith.addf %11, %13 : vector<2x512xf32>
    %c0_13 = arith.constant 0 : index
    %c0_14 = arith.constant 0 : index
    %15 = vector.load %arg9[%c0_13, %c0_14] : memref<2x512xf32, #tpu.memory_space<vmem>>, vector<2x512xf32>
    tpu.vector_store %arg9[%c0_13, %c0_14], %14 {strides = array<i32>} : memref<2x512xf32, #tpu.memory_space<vmem>>, vector<2x512xf32>,
    return
  }
  func.func @transform_0(%arg0: i32, %arg1: i32) -> (i32, i32) {
    %c0_i32 = arith.constant 0 : i32
    return %arg0, %arg1 : i32, i32
  }
  func.func @transform_1(%arg0: i32, %arg1: i32) -> (i32, i32) {
    %c0_i32 = arith.constant 0 : i32
    return %arg0, %arg1 : i32, i32
  }
  func.func @transform_2(%arg0: i32, %arg1: i32) -> (i32, i32) {
    %c0_i32 = arith.constant 0 : i32
    %c0_i32_0 = arith.constant 0 : i32
    return %c0_i32, %arg1 : i32, i32
  }
  func.func @transform_3(%arg0: i32, %arg1: i32) -> (i32, i32) {
    %c0_i32 = arith.constant 0 : i32
    %c0_i32_0 = arith.constant 0 : i32
    return %c0_i32, %arg1 : i32, i32
  }
  func.func @transform_4(%arg0: i32, %arg1: i32) -> (i32, i32) {
    %c0_i32 = arith.constant 0 : i32
    %c0_i32_0 = arith.constant 0 : i32
    return %c0_i32, %arg1 : i32, i32
  }
  func.func @transform_5(%arg0: i32, %arg1: i32) -> (i32, i32) {
    %c0_i32 = arith.constant 0 : i32
    %c0_i32_0 = arith.constant 0 : i32
    return %c0_i32, %arg1 : i32, i32
  }
  func.func @transform_6(%arg0: i32, %arg1: i32) -> (i32, i32) {
    %c0_i32 = arith.constant 0 : i32
    return %arg0, %arg1 : i32, i32
  }
  func.func @transform_7(%arg0: i32, %arg1: i32) -> (i32, i32) {
    %c0_i32 = arith.constant 0 : i32
    return %arg0, %arg1 : i32, i32
  }
}

</mosaic_0001>

<llo_original>
// kernel: tpu_custom_call.1
$region0: #{tpu_custom_call.1}
  #allocation0 [shape = 'u32[]', space=smem, size = 0x4, offset = 0x4, fixed_abs, tag = 'smem constant byte address 0x4 - core index']
  #allocation1 [shape = 'u32[72,128]{1,0:T(1,128)}', space=vmem, size = 0x9000, scoped, tag = 'internal scratch']
  %s0 = inlined_call_operand.hbm [shape: f32[2,1024], index: 0, kind: input, shape index: {}]
  %s1 = inlined_call_operand.hbm [shape: f32[2,1024], index: 1, kind: input, shape index: {}]
  %s2 = inlined_call_operand.hbm [shape: f32[1,1024], index: 2, kind: input, shape index: {}]
  %s3 = inlined_call_operand.hbm [shape: f32[1,1024], index: 3, kind: input, shape index: {}]
  %s4 = inlined_call_operand.hbm [shape: f32[1,1024], index: 4, kind: input, shape index: {}]
  %s5 = inlined_call_operand.hbm [shape: f32[1,1024], index: 5, kind: input, shape index: {}]
  %s6 = inlined_call_operand.hbm [shape: f32[2,1024], index: 6, kind: output, shape index: {0}]
  %s7 = inlined_call_operand.hbm [shape: f32[2,1024], index: 7, kind: output, shape index: {1}]
  %8 = xla_tuple %s6, %s7
  %s9 = sld [smem:[#allocation0]]
  $region89: #{tpu_custom_call.1} parent=0
    _
  %s11 = ssub.s32 1, %s9
  %s12 = scalar_select 0, %s11, %s9
  $region1: #{tpu_custom_call.1} parent=0
    #allocation2 [shape = 'u8[8192]{0}', space=vmem, size = 0x2000, scoped, tag = 'input window, operand 0']
    #allocation3 [shape = 's32[2]{0}', space=sflag, size = 0x8, scoped, tag = 'scoped memory for tpu_custom_call.1']
    #allocation4 [shape = 's32[2]{0}', space=sflag, size = 0x8, scoped, tag = 'scoped memory for tpu_custom_call.1']
    #allocation5 [shape = 'u8[8192]{0}', space=vmem, size = 0x2000, scoped, tag = 'input window, operand 1']
    #allocation6 [shape = 's32[2]{0}', space=sflag, size = 0x8, scoped, tag = 'scoped memory for tpu_custom_call.1']
    #allocation7 [shape = 'u8[2048]{0}', space=vmem, size = 0x800, scoped, tag = 'input window, operand 2, single buffered']
    #allocation8 [shape = 'u8[2048]{0}', space=vmem, size = 0x800, scoped, tag = 'input window, operand 3, single buffered']
    #allocation9 [shape = 's32[1]{0}', space=sflag, size = 0x4, scoped, tag = 'scoped memory for tpu_custom_call.1']
    #allocation10 [shape = 'u8[2048]{0}', space=vmem, size = 0x800, scoped, tag = 'input window, operand 4, single buffered']
    #allocation11 [shape = 'u8[2048]{0}', space=vmem, size = 0x800, scoped, tag = 'input window, operand 5, single buffered']
    #allocation12 [shape = 's32[1]{0}', space=sflag, size = 0x4, scoped, tag = 'scoped memory for tpu_custom_call.1']
    #allocation13 [shape = 'u8[8192]{0}', space=vmem, size = 0x2000, scoped, tag = 'output window, operand 0']
    #allocation14 [shape = 'u8[8192]{0}', space=vmem, size = 0x2000, scoped, tag = 'output window, operand 1']
    #allocation15 [shape = 's32[2]{0}', space=sflag, size = 0x8, scoped, tag = 'scoped memory for tpu_custom_call.1']
    %13 = vsyncpa [#allocation3], 0
    %s14 = scalar_lea.sflag [#allocation3], 1
    %15 = vsyncpa %s14, 0
    %16 = vsyncpa [#allocation6], 0
    %s17 = scalar_lea.sflag [#allocation6], 1
    %18 = vsyncpa %s17, 0
    %19 = vsyncpa [#allocation9], 0
    %20 = vsyncpa [#allocation12], 0
    %21 = vsyncpa [#allocation4], 0
    %s22 = scalar_lea.sflag [#allocation4], 1
    %23 = vsyncpa %s22, 0
    %24 = vsyncpa [#allocation15], 0
    %s25 = scalar_lea.sflag [#allocation15], 1
    %26 = vsyncpa %s25, 0
    loop: start=0, step=1, limit=4
    $region2: #{tpu_custom_call.1} parent=1 // loop_pre_header
      _
    $region3: #{tpu_custom_call.1} parent=1 // loop_header
      %s28 = sphi 0, %s32
      %p29 = scmp.ge.s32.totalorder %s28, 4
      %s35 = sphi 0, %s47
      %s36 = sphi 0, %s43
      %s37 = sphi 0, %s35
      %s38 = sphi 0, %s36
      %s39 = sphi 0, %s37
      %s40 = sphi 0, %s38
      %s52 = sphi 0, %s54
      %s55 = sphi 0, %s52
      %s56 = sphi 0, %s55
      %s72 = sphi 0, %s56
      %s80 = sphi 0, %s82
      %s83 = sphi 0, %s80
      %s84 = sphi 0, %s83
      %s100 = sphi 0, %s84
      %s106 = sphi 0, %s108
      %s109 = sphi 0, %s106
      %s110 = sphi 0, %s109
      %s126 = sphi 0, %s110
      %s132 = sphi 0, %s134
      %s135 = sphi 0, %s132
      %s136 = sphi 0, %s135
      %s152 = sphi 0, %s136
      %s158 = sphi 0, %s160
      %s161 = sphi 0, %s158
      %s162 = sphi 0, %s161
      %s178 = sphi 0, %s162
      %s184 = sphi 0, %s186
      %s187 = sphi 0, %s184
      %s188 = sphi 0, %s187
      %s204 = sphi 0, %s188
      %s212 = sphi 0, %s214
      %s215 = sphi 0, %s212
      %s216 = sphi 0, %s215
      %s232 = sphi 0, %s216
      %s240 = sphi 0, %s242
      %s243 = sphi 0, %s240
      %s244 = sphi 0, %s243
      %s260 = sphi 0, %s244
    $region4: #{tpu_custom_call.1} parent=1 // loop_header_branch
      %31 = sbr.rel (%p29) target = $region8
    $region5: #{tpu_custom_call.1} parent=1 // loop_body
      %s33 = ssub.s32 %s28, 1
      %s34 = ssub.s32 %s28, 2
      %s41 = sadd.s32 1, %s36
      %p42 = scmp.ge.s32.totalorder %s41, 2
      %s43 = scalar_select %p42, 0, %s41
      %s44 = sadd.s32 1, %s35
      %s45 = scalar_select %p42, %s44, %s35
      %p46 = scmp.ge.s32.totalorder %s45, 1
      %s47 = scalar_select %p46, 0, %s45
      %s48 = ssub.s32 %s35, %s47
      %s49 = ssub.s32 %s36, %s43
      %s50 = sor.u32 %s48, %s49
      %p51 = scmp.eq.s32.totalorder %s50, 0
      %s53 = sadd.s32 %s52, 1
      %s54 = scalar_select %p51, %s52, %s53
      %p57 = pneg %p51
      %p58 = scmp.eq.s32.totalorder %s28, 1
      %p59 = por %p57, %p58
      %p60 = scmp.ne.s32.totalorder %s52, %s55
      %p61 = scmp.eq.s32.totalorder %s28, 0
      %p62 = por %p60, %p61
      %p63 = scmp.ne.s32.totalorder %s52, %s55
      %p64 = scmp.eq.s32.totalorder %s33, 1
      %p65 = por %p63, %p64
      %p66 = scmp.ne.s32.totalorder %s55, %s56
      %p67 = scmp.eq.s32.totalorder %s33, 0
      %p68 = por %p66, %p67
      %p69 = scmp.ne.s32.totalorder %s55, %s56
      %p70 = scmp.eq.s32.totalorder %s34, 1
      %p71 = por %p69, %p70
      %p73 = scmp.ne.s32.totalorder %s56, %s72
      %p74 = scmp.eq.s32.totalorder %s34, 0
      %p75 = por %p73, %p74
      %s76 = ssub.s32 %s35, %s47
      %s77 = ssub.s32 %s36, %s43
      %s78 = sor.u32 %s76, %s77
      %p79 = scmp.eq.s32.totalorder %s78, 0
      %s81 = sadd.s32 %s80, 1
      %s82 = scalar_select %p79, %s80, %s81
      %p85 = pneg %p79
      %p86 = scmp.eq.s32.totalorder %s28, 1
      %p87 = por %p85, %p86
      %p88 = scmp.ne.s32.totalorder %s80, %s83
      %p89 = scmp.eq.s32.totalorder %s28, 0
      %p90 = por %p88, %p89
      %p91 = scmp.ne.s32.totalorder %s80, %s83
      %p92 = scmp.eq.s32.totalorder %s33, 1
      %p93 = por %p91, %p92
      %p94 = scmp.ne.s32.totalorder %s83, %s84
      %p95 = scmp.eq.s32.totalorder %s33, 0
      %p96 = por %p94, %p95
      %p97 = scmp.ne.s32.totalorder %s83, %s84
      %p98 = scmp.eq.s32.totalorder %s34, 1
      %p99 = por %p97, %p98
      %p101 = scmp.ne.s32.totalorder %s84, %s100
      %p102 = scmp.eq.s32.totalorder %s34, 0
      %p103 = por %p101, %p102
      %s104 = ssub.s32 %s36, %s43
      %p105 = scmp.eq.s32.totalorder %s104, 0
      %s107 = sadd.s32 %s106, 1
      %s108 = scalar_select %p105, %s106, %s107
      %p111 = pneg %p105
      %p112 = scmp.eq.s32.totalorder %s28, 1
      %p113 = por %p111, %p112
      %p114 = scmp.ne.s32.totalorder %s106, %s109
      %p115 = scmp.eq.s32.totalorder %s28, 0
      %p116 = por %p114, %p115
      %p117 = scmp.ne.s32.totalorder %s106, %s109
      %p118 = scmp.eq.s32.totalorder %s33, 1
      %p119 = por %p117, %p118
      %p120 = scmp.ne.s32.totalorder %s109, %s110
      %p121 = scmp.eq.s32.totalorder %s33, 0
      %p122 = por %p120, %p121
      %p123 = scmp.ne.s32.totalorder %s109, %s110
      %p124 = scmp.eq.s32.totalorder %s34, 1
      %p125 = por %p123, %p124
      %p127 = scmp.ne.s32.totalorder %s110, %s126
      %p128 = scmp.eq.s32.totalorder %s34, 0
      %p129 = por %p127, %p128
      %s130 = ssub.s32 %s36, %s43
      %p131 = scmp.eq.s32.totalorder %s130, 0
      %s133 = sadd.s32 %s132, 1
      %s134 = scalar_select %p131, %s132, %s133
      %p137 = pneg %p131
      %p138 = scmp.eq.s32.totalorder %s28, 1
      %p139 = por %p137, %p138
      %p140 = scmp.ne.s32.totalorder %s132, %s135
      %p141 = scmp.eq.s32.totalorder %s28, 0
      %p142 = por %p140, %p141
      %p143 = scmp.ne.s32.totalorder %s132, %s135
      %p144 = scmp.eq.s32.totalorder %s33, 1
      %p145 = por %p143, %p144
      %p146 = scmp.ne.s32.totalorder %s135, %s136
      %p147 = scmp.eq.s32.totalorder %s33, 0
      %p148 = por %p146, %p147
      %p149 = scmp.ne.s32.totalorder %s135, %s136
      %p150 = scmp.eq.s32.totalorder %s34, 1
      %p151 = por %p149, %p150
      %p153 = scmp.ne.s32.totalorder %s136, %s152
      %p154 = scmp.eq.s32.totalorder %s34, 0
      %p155 = por %p153, %p154
      %s156 = ssub.s32 %s36, %s43
      %p157 = scmp.eq.s32.totalorder %s156, 0
      %s159 = sadd.s32 %s158, 1
      %s160 = scalar_select %p157, %s158, %s159
      %p163 = pneg %p157
      %p164 = scmp.eq.s32.totalorder %s28, 1
      %p165 = por %p163, %p164
      %p166 = scmp.ne.s32.totalorder %s158, %s161
      %p167 = scmp.eq.s32.totalorder %s28, 0
      %p168 = por %p166, %p167
      %p169 = scmp.ne.s32.totalorder %s158, %s161
      %p170 = scmp.eq.s32.totalorder %s33, 1
      %p171 = por %p169, %p170
      %p172 = scmp.ne.s32.totalorder %s161, %s162
      %p173 = scmp.eq.s32.totalorder %s33, 0
      %p174 = por %p172, %p173
      %p175 = scmp.ne.s32.totalorder %s161, %s162
      %p176 = scmp.eq.s32.totalorder %s34, 1
      %p177 = por %p175, %p176
      %p179 = scmp.ne.s32.totalorder %s162, %s178
      %p180 = scmp.eq.s32.totalorder %s34, 0
      %p181 = por %p179, %p180
      %s182 = ssub.s32 %s36, %s43
      %p183 = scmp.eq.s32.totalorder %s182, 0
      %s185 = sadd.s32 %s184, 1
      %s186 = scalar_select %p183, %s184, %s185
      %p189 = pneg %p183
      %p190 = scmp.eq.s32.totalorder %s28, 1
      %p191 = por %p189, %p190
      %p192 = scmp.ne.s32.totalorder %s184, %s187
      %p193 = scmp.eq.s32.totalorder %s28, 0
      %p194 = por %p192, %p193
      %p195 = scmp.ne.s32.totalorder %s184, %s187
      %p196 = scmp.eq.s32.totalorder %s33, 1
      %p197 = por %p195, %p196
      %p198 = scmp.ne.s32.totalorder %s187, %s188
      %p199 = scmp.eq.s32.totalorder %s33, 0
      %p200 = por %p198, %p199
      %p201 = scmp.ne.s32.totalorder %s187, %s188
      %p202 = scmp.eq.s32.totalorder %s34, 1
      %p203 = por %p201, %p202
      %p205 = scmp.ne.s32.totalorder %s188, %s204
      %p206 = scmp.eq.s32.totalorder %s34, 0
      %p207 = por %p205, %p206
      %s208 = ssub.s32 %s35, %s47
      %s209 = ssub.s32 %s36, %s43
      %s210 = sor.u32 %s208, %s209
      %p211 = scmp.eq.s32.totalorder %s210, 0
      %s213 = sadd.s32 %s212, 1
      %s214 = scalar_select %p211, %s212, %s213
      %p217 = pneg %p211
      %p218 = scmp.eq.s32.totalorder %s28, 1
      %p219 = por %p217, %p218
      %p220 = scmp.ne.s32.totalorder %s212, %s215
      %p221 = scmp.eq.s32.totalorder %s28, 0
      %p222 = por %p220, %p221
      %p223 = scmp.ne.s32.totalorder %s212, %s215
      %p224 = scmp.eq.s32.totalorder %s33, 1
      %p225 = por %p223, %p224
      %p226 = scmp.ne.s32.totalorder %s215, %s216
      %p227 = scmp.eq.s32.totalorder %s33, 0
      %p228 = por %p226, %p227
      %p229 = scmp.ne.s32.totalorder %s215, %s216
      %p230 = scmp.eq.s32.totalorder %s34, 1
      %p231 = por %p229, %p230
      %p233 = scmp.ne.s32.totalorder %s216, %s232
      %p234 = scmp.eq.s32.totalorder %s34, 0
      %p235 = por %p233, %p234
      %s236 = ssub.s32 %s35, %s47
      %s237 = ssub.s32 %s36, %s43
      %s238 = sor.u32 %s236, %s237
      %p239 = scmp.eq.s32.totalorder %s238, 0
      %s241 = sadd.s32 %s240, 1
      %s242 = scalar_select %p239, %s240, %s241
      %p245 = pneg %p239
      %p246 = scmp.eq.s32.totalorder %s28, 1
      %p247 = por %p245, %p246
      %p248 = scmp.ne.s32.totalorder %s240, %s243
      %p249 = scmp.eq.s32.totalorder %s28, 0
      %p250 = por %p248, %p249
      %p251 = scmp.ne.s32.totalorder %s240, %s243
      %p252 = scmp.eq.s32.totalorder %s33, 1
      %p253 = por %p251, %p252
      %p254 = scmp.ne.s32.totalorder %s243, %s244
      %p255 = scmp.eq.s32.totalorder %s33, 0
      %p256 = por %p254, %p255
      %p257 = scmp.ne.s32.totalorder %s243, %s244
      %p258 = scmp.eq.s32.totalorder %s34, 1
      %p259 = por %p257, %p258
      %p261 = scmp.ne.s32.totalorder %s244, %s260
      %p262 = scmp.eq.s32.totalorder %s34, 0
      %p263 = por %p261, %p262
      %p264 = scmp.le.s32.totalorder 1, %s28
      %p265 = scmp.lt.s32.totalorder %s28, 3
      %p266 = pnand %p264, %p265
      %p267 = pneg %p266
      // Predicated region
      $region9: #{tpu_custom_call.1} parent=5 // pred_check
        _
      $region10: #{tpu_custom_call.1} parent=5 // pred_check_branch
        %269 = sbr.rel (%p266) target = $region12
      $region11: #{tpu_custom_call.1} parent=5 // pred_region
        %s270 = ssub.s32 %s28, 1
        // Predicated region
        $region13: #{tpu_custom_call.1} parent=11 // pred_check
          %p271 = pneg %p122
        $region14: #{tpu_custom_call.1} parent=11 // pred_check_branch
          %273 = sbr.rel (%p271) target = $region16
        $region15: #{tpu_custom_call.1} parent=11 // pred_region
          %s274 = smul.u32 4, %s38
          %276 = vsyncadd [#allocation6], 0
          %s277 = scalar_lea.hbm %s2, %s274
          %s279 = sshll.u32 %s277, 4
          %s280 = int_to_ptr.hbm [resolvable:$true] %s279
          %s281 = sshll.u32 [#allocation7], 4
          %s282 = int_to_ptr.vmem [resolvable:$true] %s281
          %284 = dma.hbm_to_vmem [thread:$0]  %s280, 64, %s282, [#allocation6]
        $region16: #{tpu_custom_call.1} parent=11 // pred_fallthru
          _
        // Predicated region
        $region17: #{tpu_custom_call.1} parent=11 // pred_check
          %p285 = pneg %p148
        $region18: #{tpu_custom_call.1} parent=11 // pred_check_branch
          %287 = sbr.rel (%p285) target = $region20
        $region19: #{tpu_custom_call.1} parent=11 // pred_region
          %s288 = smul.u32 4, %s38
          %290 = vsyncadd [#allocation9], 0
          %s291 = scalar_lea.hbm %s3, %s288
          %s293 = sshll.u32 %s291, 4
          %s294 = int_to_ptr.hbm [resolvable:$true] %s293
          %s295 = sshll.u32 [#allocation8], 4
          %s296 = int_to_ptr.vmem [resolvable:$true] %s295
          %298 = dma.hbm_to_vmem [thread:$0]  %s294, 64, %s296, [#allocation9]
        $region20: #{tpu_custom_call.1} parent=11 // pred_fallthru
          _
        // Predicated region
        $region21: #{tpu_custom_call.1} parent=11 // pred_check
          %p299 = pneg %p174
        $region22: #{tpu_custom_call.1} parent=11 // pred_check_branch
          %301 = sbr.rel (%p299) target = $region24
        $region23: #{tpu_custom_call.1} parent=11 // pred_region
          %s302 = smul.u32 4, %s38
          %304 = vsyncadd [#allocation9], 0
          %s305 = scalar_lea.hbm %s4, %s302
          %s307 = sshll.u32 %s305, 4
          %s308 = int_to_ptr.hbm [resolvable:$true] %s307
          %s309 = sshll.u32 [#allocation10], 4
          %s310 = int_to_ptr.vmem [resolvable:$true] %s309
          %312 = dma.hbm_to_vmem [thread:$0]  %s308, 64, %s310, [#allocation9]
        $region24: #{tpu_custom_call.1} parent=11 // pred_fallthru
          _
        // Predicated region
        $region25: #{tpu_custom_call.1} parent=11 // pred_check
          %p313 = pneg %p200
        $region26: #{tpu_custom_call.1} parent=11 // pred_check_branch
          %315 = sbr.rel (%p313) target = $region28
        $region27: #{tpu_custom_call.1} parent=11 // pred_region
          %s316 = smul.u32 4, %s38
          %318 = vsyncadd [#allocation12], 0
          %s319 = scalar_lea.hbm %s5, %s316
          %s321 = sshll.u32 %s319, 4
          %s322 = int_to_ptr.hbm [resolvable:$true] %s321
          %s323 = sshll.u32 [#allocation11], 4
          %s324 = int_to_ptr.vmem [resolvable:$true] %s323
          %326 = dma.hbm_to_vmem [thread:$0]  %s322, 64, %s324, [#allocation12]
        $region28: #{tpu_custom_call.1} parent=11 // pred_fallthru
          _
      $region12: #{tpu_custom_call.1} parent=5 // pred_fallthru
        _
      %p327 = scmp.lt.s32.totalorder %s28, 2
      // Predicated region
      $region29: #{tpu_custom_call.1} parent=5 // pred_check
        %p328 = pneg %p327
      $region30: #{tpu_custom_call.1} parent=5 // pred_check_branch
        %330 = sbr.rel (%p328) target = $region32
      $region31: #{tpu_custom_call.1} parent=5 // pred_region
        // Predicated region
        $region33: #{tpu_custom_call.1} parent=31 // pred_check
          %p331 = pneg %p62
        $region34: #{tpu_custom_call.1} parent=31 // pred_check_branch
          %333 = sbr.rel (%p331) target = $region36
        $region35: #{tpu_custom_call.1} parent=31 // pred_region
          %s334 = sand.u32 %s52, 1
          %s335 = scalar_lea.sflag [#allocation3], %s334
          %s336 = sand.u32 %s52, 1
          %s337 = smul.addr %s336, 8
          %s338 = scalar_lea.vmem [#allocation2], %s337
          %s339 = smul.u32 4, %s36
          %341 = vsyncadd %s335, 0
          %s342 = smul.addr %s35, 8
          %s343 = sadd.s32 %s339, %s342
          %s344 = smul.addr %s343, 2
          %s345 = scalar_lea.hbm %s0, %s344
          %s347 = sshll.u32 %s345, 4
          %s348 = int_to_ptr.hbm [resolvable:$true] %s347
          %s349 = sshll.u32 %s338, 4
          %s350 = int_to_ptr.vmem [resolvable:$true] %s349
          %352 = dma.hbm_to_vmem [thread:$0]  %s348, 128, %s350, %s335
        $region36: #{tpu_custom_call.1} parent=31 // pred_fallthru
          _
        // Predicated region
        $region37: #{tpu_custom_call.1} parent=31 // pred_check
          %p353 = pneg %p90
        $region38: #{tpu_custom_call.1} parent=31 // pred_check_branch
          %355 = sbr.rel (%p353) target = $region40
        $region39: #{tpu_custom_call.1} parent=31 // pred_region
          %s356 = sand.u32 %s28, 1
          %s357 = scalar_lea.sflag [#allocation6], %s356
          %s358 = sand.u32 %s80, 1
          %s359 = smul.addr %s358, 8
          %s360 = scalar_lea.vmem [#allocation5], %s359
          %s361 = smul.u32 4, %s36
          %363 = vsyncadd %s357, 0
          %s364 = smul.addr %s35, 8
          %s365 = sadd.s32 %s361, %s364
          %s366 = smul.addr %s365, 2
          %s367 = scalar_lea.hbm %s1, %s366
          %s369 = sshll.u32 %s367, 4
          %s370 = int_to_ptr.hbm [resolvable:$true] %s369
          %s371 = sshll.u32 %s360, 4
          %s372 = int_to_ptr.vmem [resolvable:$true] %s371
          %374 = dma.hbm_to_vmem [thread:$0]  %s370, 128, %s372, %s357
        $region40: #{tpu_custom_call.1} parent=31 // pred_fallthru
          _
      $region32: #{tpu_custom_call.1} parent=5 // pred_fallthru
        _
      %p375 = scmp.le.s32.totalorder 1, %s28
      %p376 = scmp.lt.s32.totalorder %s28, 3
      %p377 = pnand %p375, %p376
      %p378 = pneg %p377
      // Predicated region
      $region41: #{tpu_custom_call.1} parent=5 // pred_check
        _
      $region42: #{tpu_custom_call.1} parent=5 // pred_check_branch
        %380 = sbr.rel (%p377) target = $region44
      $region43: #{tpu_custom_call.1} parent=5 // pred_region
        %s381 = ssub.s32 %s28, 1
        %s382 = sand.u32 %s55, 1
        %s383 = scalar_lea.sflag [#allocation3], %s382
        %s384 = sand.u32 %s55, 1
        %s385 = smul.addr %s384, 8
        %s386 = scalar_lea.vmem [#allocation2], %s385
        // Predicated region
        $region45: #{tpu_custom_call.1} parent=43 // pred_check
          %p387 = pneg %p68
        $region46: #{tpu_custom_call.1} parent=43 // pred_check_branch
          %389 = sbr.rel (%p387) target = $region48
        $region47: #{tpu_custom_call.1} parent=43 // pred_region
          %391 = dma.done %s383, 128
        $region48: #{tpu_custom_call.1} parent=43 // pred_fallthru
          _
        %s392 = sand.u32 %s33, 1
        %s393 = scalar_lea.sflag [#allocation6], %s392
        %s394 = sand.u32 %s83, 1
        %s395 = smul.addr %s394, 8
        %s396 = scalar_lea.vmem [#allocation5], %s395
        // Predicated region
        $region49: #{tpu_custom_call.1} parent=43 // pred_check
          %p397 = pneg %p96
        $region50: #{tpu_custom_call.1} parent=43 // pred_check_branch
          %399 = sbr.rel (%p397) target = $region52
        $region51: #{tpu_custom_call.1} parent=43 // pred_region
          %401 = dma.done %s393, 128
        $region52: #{tpu_custom_call.1} parent=43 // pred_fallthru
          _
        // Predicated region
        $region53: #{tpu_custom_call.1} parent=43 // pred_check
          %p402 = pneg %p122
        $region54: #{tpu_custom_call.1} parent=43 // pred_check_branch
          %404 = sbr.rel (%p402) target = $region56
        $region55: #{tpu_custom_call.1} parent=43 // pred_region
          %406 = dma.done [#allocation6], 64
        $region56: #{tpu_custom_call.1} parent=43 // pred_fallthru
          _
        // Predicated region
        $region57: #{tpu_custom_call.1} parent=43 // pred_check
          %p407 = pneg %p148
        $region58: #{tpu_custom_call.1} parent=43 // pred_check_branch
          %409 = sbr.rel (%p407) target = $region60
        $region59: #{tpu_custom_call.1} parent=43 // pred_region
          %411 = dma.done [#allocation9], 64
        $region60: #{tpu_custom_call.1} parent=43 // pred_fallthru
          _
        // Predicated region
        $region61: #{tpu_custom_call.1} parent=43 // pred_check
          %p412 = pneg %p174
        $region62: #{tpu_custom_call.1} parent=43 // pred_check_branch
          %414 = sbr.rel (%p412) target = $region64
        $region63: #{tpu_custom_call.1} parent=43 // pred_region
          %416 = dma.done [#allocation9], 64
        $region64: #{tpu_custom_call.1} parent=43 // pred_fallthru
          _
        // Predicated region
        $region65: #{tpu_custom_call.1} parent=43 // pred_check
          %p417 = pneg %p200
        $region66: #{tpu_custom_call.1} parent=43 // pred_check_branch
          %419 = sbr.rel (%p417) target = $region68
        $region67: #{tpu_custom_call.1} parent=43 // pred_region
          %421 = dma.done [#allocation12], 64
        $region68: #{tpu_custom_call.1} parent=43 // pred_fallthru
          _
        %s422 = sand.u32 %s55, 1
        %s423 = scalar_lea.sflag [#allocation3], %s422
        %s424 = sand.u32 %s55, 1
        %s425 = smul.addr %s424, 8
        %s426 = scalar_lea.vmem [#allocation2], %s425
        %p427 = pneg %p68
        %p428 = pneg %p65
        %s429 = sand.u32 %s33, 1
        %s430 = scalar_lea.sflag [#allocation6], %s429
        %s431 = sand.u32 %s83, 1
        %s432 = smul.addr %s431, 8
        %s433 = scalar_lea.vmem [#allocation5], %s432
        %p434 = pneg %p96
        %p435 = pneg %p93
        %p436 = pneg %p122
        %p437 = pneg %p119
        %p438 = pneg %p148
        %p439 = pneg %p145
        %p440 = pneg %p174
        %p441 = pneg %p171
        %p442 = pneg %p200
        %p443 = pneg %p197
        %p444 = pneg %p228
        %p445 = pneg %p225
        %s446 = sand.u32 %s215, 1
        %s447 = scalar_lea.sflag [#allocation4], %s446
        %s448 = sand.u32 %s215, 1
        %s449 = smul.addr %s448, 8
        %s450 = scalar_lea.vmem [#allocation13], %s449
        %p451 = pneg %p256
        %p452 = pneg %p253
        %s453 = sand.u32 %s243, 1
        %s454 = scalar_lea.sflag [#allocation15], %s453
        %s455 = sand.u32 %s243, 1
        %s456 = smul.addr %s455, 8
        %s457 = scalar_lea.vmem [#allocation14], %s456
        %s458 = smul.u32 4, %s38
        %s459 = smul.u32 4, %s38
        %s460 = smul.u32 4, %s38
        %s461 = smul.u32 4, %s38
        %s462 = smul.u32 4, %s38
        %s463 = smul.u32 4, %s38
        %s464 = smul.u32 4, %s38
        %s465 = smul.u32 4, %s38
        %v466 = vld [vmem:[%s386] sm:$0xff]
        %v467 = vld [vmem:[%s396] sm:$0xff]
        %v468 = vld [vmem:[#allocation7] sm:$0xf]
        %v470 = vperm.slane %v468, 0
        %v471 = vperm.slane %v468, 1
        %v472 = vperm.slane %v468, 2
        %v473 = vperm.slane %v468, 3
        %v474 = vrot.slane %v471, 6
        %v475 = vrot.slane %v472, 4
        %v476 = vrot.slane %v473, 2
        %vm477 = vcmask 1041408
        %v478 = vsel %vm477, %v470, %v474
        %vm479 = vcmask 1045508
        %v480 = vsel %vm479, %v475, %v476
        %vm481 = vcmask 1043456
        %v482 = vsel %vm481, %v478, %v480
        %v484 = vmul.f32 %v466, %v482
        %v485 = vld [vmem:[#allocation8] sm:$0xf]
        %v487 = vperm.slane %v485, 0
        %v488 = vperm.slane %v485, 1
        %v489 = vperm.slane %v485, 2
        %v490 = vperm.slane %v485, 3
        %v491 = vrot.slane %v488, 6
        %v492 = vrot.slane %v489, 4
        %v493 = vrot.slane %v490, 2
        %v494 = vsel %vm477, %v487, %v491
        %v495 = vsel %vm479, %v492, %v493
        %v496 = vsel %vm481, %v494, %v495
        %v498 = vadd.f32 %v484, %v496
        %499 = vst [vmem:[%s450] sm:$0xff] %v498
        %v500 = vld [vmem:[#allocation10] sm:$0xf]
        %v502 = vperm.slane %v500, 0
        %v503 = vperm.slane %v500, 1
        %v504 = vperm.slane %v500, 2
        %v505 = vperm.slane %v500, 3
        %v506 = vrot.slane %v503, 6
        %v507 = vrot.slane %v504, 4
        %v508 = vrot.slane %v505, 2
        %v509 = vsel %vm477, %v502, %v506
        %v510 = vsel %vm479, %v507, %v508
        %v511 = vsel %vm481, %v509, %v510
        %v513 = vmul.f32 %v467, %v511
        %v514 = vld [vmem:[#allocation11] sm:$0xf]
        %v516 = vperm.slane %v514, 0
        %v517 = vperm.slane %v514, 1
        %v518 = vperm.slane %v514, 2
        %v519 = vperm.slane %v514, 3
        %v520 = vrot.slane %v517, 6
        %v521 = vrot.slane %v518, 4
        %v522 = vrot.slane %v519, 2
        %v523 = vsel %vm477, %v516, %v520
        %v524 = vsel %vm479, %v521, %v522
        %v525 = vsel %vm481, %v523, %v524
        %v527 = vadd.f32 %v513, %v525
        %528 = vst [vmem:[%s457] sm:$0xff] %v527
        %s529 = sand.u32 %s215, 1
        %s530 = scalar_lea.sflag [#allocation4], %s529
        %s531 = sand.u32 %s215, 1
        %s532 = smul.addr %s531, 8
        %s533 = scalar_lea.vmem [#allocation13], %s532
        %s534 = sand.u32 %s243, 1
        %s535 = scalar_lea.sflag [#allocation15], %s534
        %s536 = sand.u32 %s243, 1
        %s537 = smul.addr %s536, 8
        %s538 = scalar_lea.vmem [#allocation14], %s537
        // Predicated region
        $region69: #{tpu_custom_call.1} parent=43 // pred_check
          %p539 = pneg %p225
        $region70: #{tpu_custom_call.1} parent=43 // pred_check_branch
          %541 = sbr.rel (%p539) target = $region72
        $region71: #{tpu_custom_call.1} parent=43 // pred_region
          %s542 = smul.u32 4, %s38
          %544 = vsyncadd %s530, 0
          %s545 = smul.addr %s37, 8
          %s546 = sadd.s32 %s542, %s545
          %s547 = smul.addr %s546, 2
          %s548 = scalar_lea.hbm %s6, %s547
          %s550 = sshll.u32 %s533, 4
          %s551 = int_to_ptr.vmem [resolvable:$true] %s550
          %s552 = sshll.u32 %s548, 4
          %s553 = int_to_ptr.hbm [resolvable:$true] %s552
          %555 = dma.vmem_to_hbm [thread:$0]  %s551, 128, %s553, %s530
        $region72: #{tpu_custom_call.1} parent=43 // pred_fallthru
          _
        // Predicated region
        $region73: #{tpu_custom_call.1} parent=43 // pred_check
          %p556 = pneg %p253
        $region74: #{tpu_custom_call.1} parent=43 // pred_check_branch
          %558 = sbr.rel (%p556) target = $region76
        $region75: #{tpu_custom_call.1} parent=43 // pred_region
          %s559 = smul.u32 4, %s38
          %561 = vsyncadd %s535, 0
          %s562 = smul.addr %s37, 8
          %s563 = sadd.s32 %s559, %s562
          %s564 = smul.addr %s563, 2
          %s565 = scalar_lea.hbm %s7, %s564
          %s567 = sshll.u32 %s538, 4
          %s568 = int_to_ptr.vmem [resolvable:$true] %s567
          %s569 = sshll.u32 %s565, 4
          %s570 = int_to_ptr.hbm [resolvable:$true] %s569
          %572 = dma.vmem_to_hbm [thread:$0]  %s568, 128, %s570, %s535
        $region76: #{tpu_custom_call.1} parent=43 // pred_fallthru
          _
      $region44: #{tpu_custom_call.1} parent=5 // pred_fallthru
        _
      %p573 = scmp.le.s32.totalorder 2, %s28
      // Predicated region
      $region77: #{tpu_custom_call.1} parent=5 // pred_check
        %p574 = pneg %p573
      $region78: #{tpu_custom_call.1} parent=5 // pred_check_branch
        %576 = sbr.rel (%p574) target = $region80
      $region79: #{tpu_custom_call.1} parent=5 // pred_region
        %s577 = ssub.s32 %s28, 2
        // Predicated region
        $region81: #{tpu_custom_call.1} parent=79 // pred_check
          %p578 = pneg %p231
        $region82: #{tpu_custom_call.1} parent=79 // pred_check_branch
          %580 = sbr.rel (%p578) target = $region84
        $region83: #{tpu_custom_call.1} parent=79 // pred_region
          %s581 = sand.u32 %s216, 1
          %s582 = scalar_lea.sflag [#allocation4], %s581
          %s583 = sand.u32 %s216, 1
          %s584 = smul.addr %s583, 8
          %s585 = scalar_lea.vmem [#allocation13], %s584
          %587 = dma.done %s582, 128
        $region84: #{tpu_custom_call.1} parent=79 // pred_fallthru
          _
        // Predicated region
        $region85: #{tpu_custom_call.1} parent=79 // pred_check
          %p588 = pneg %p259
        $region86: #{tpu_custom_call.1} parent=79 // pred_check_branch
          %590 = sbr.rel (%p588) target = $region88
        $region87: #{tpu_custom_call.1} parent=79 // pred_region
          %s591 = sand.u32 %s244, 1
          %s592 = scalar_lea.sflag [#allocation15], %s591
          %s593 = sand.u32 %s244, 1
          %s594 = smul.addr %s593, 8
          %s595 = scalar_lea.vmem [#allocation14], %s594
          %597 = dma.done %s592, 128
        $region88: #{tpu_custom_call.1} parent=79 // pred_fallthru
          _
      $region80: #{tpu_custom_call.1} parent=5 // pred_fallthru
        _
    $region6: #{tpu_custom_call.1} parent=1 // loop_footer
      %s32 = sadd.s32 1, %s28
    $region7: #{tpu_custom_call.1} parent=1 // loop_footer_branch
      %27 = sbr.rel target = $region3
    $region8: #{tpu_custom_call.1} parent=1 // loop_exit
      _
    %598 = vsyncpa [#allocation3], 1
    %s599 = scalar_lea.sflag [#allocation3], 1
    %600 = vsyncpa %s599, 1
    %601 = vsyncpa [#allocation6], 1
    %s602 = scalar_lea.sflag [#allocation6], 1
    %603 = vsyncpa %s602, 1
    %604 = vsyncpa [#allocation9], 1
    %605 = vsyncpa [#allocation12], 1
    %606 = vsyncpa [#allocation4], 1
    %s607 = scalar_lea.sflag [#allocation4], 1
    %608 = vsyncpa %s607, 1
    %609 = vsyncpa [#allocation15], 1
    %s610 = scalar_lea.sflag [#allocation15], 1
    %611 = vsyncpa %s610, 1

// kernel: tpu_custom_call.1
$region0: #{tpu_custom_call.1}
  #allocation0 [shape = 'u32[]', space=smem, size = 0x4, offset = 0x4, fixed_abs, tag = 'smem constant byte address 0x4 - core index']
  #allocation1 [shape = 'u32[72,128]{1,0:T(1,128)}', space=vmem, size = 0x9000, scoped, tag = 'internal scratch']
  %s0 = inlined_call_operand.hbm [shape: f32[2,1024], index: 0, kind: input, shape index: {}]
  %s1 = inlined_call_operand.hbm [shape: f32[2,1024], index: 1, kind: input, shape index: {}]
  %s2 = inlined_call_operand.hbm [shape: f32[1,1024], index: 2, kind: input, shape index: {}]
  %s3 = inlined_call_operand.hbm [shape: f32[1,1024], index: 3, kind: input, shape index: {}]
  %s4 = inlined_call_operand.hbm [shape: f32[1,1024], index: 4, kind: input, shape index: {}]
  %s5 = inlined_call_operand.hbm [shape: f32[1,1024], index: 5, kind: input, shape index: {}]
  %s6 = inlined_call_operand.hbm [shape: f32[2,1024], index: 6, kind: output, shape index: {0}]
  %s7 = inlined_call_operand.hbm [shape: f32[2,1024], index: 7, kind: output, shape index: {1}]
  %8 = xla_tuple %s6, %s7
  %s9 = sld [smem:[#allocation0]]
  $region89: #{tpu_custom_call.1} parent=0
    _
  %s11 = ssub.s32 1, %s9
  %s12 = scalar_select 0, %s11, %s9
  $region1: #{tpu_custom_call.1} parent=0
    #allocation2 [shape = 'u8[8192]{0}', space=vmem, size = 0x2000, scoped, tag = 'input window, operand 0']
    #allocation3 [shape = 's32[2]{0}', space=sflag, size = 0x8, scoped, tag = 'scoped memory for tpu_custom_call.1']
    #allocation4 [shape = 's32[2]{0}', space=sflag, size = 0x8, scoped, tag = 'scoped memory for tpu_custom_call.1']
    #allocation5 [shape = 'u8[8192]{0}', space=vmem, size = 0x2000, scoped, tag = 'input window, operand 1']
    #allocation6 [shape = 's32[2]{0}', space=sflag, size = 0x8, scoped, tag = 'scoped memory for tpu_custom_call.1']
    #allocation7 [shape = 'u8[4096]{0}', space=vmem, size = 0x1000, scoped, tag = 'input window, operand 2']
    #allocation8 [shape = 'u8[4096]{0}', space=vmem, size = 0x1000, scoped, tag = 'input window, operand 3']
    #allocation9 [shape = 's32[2]{0}', space=sflag, size = 0x8, scoped, tag = 'scoped memory for tpu_custom_call.1']
    #allocation10 [shape = 'u8[4096]{0}', space=vmem, size = 0x1000, scoped, tag = 'input window, operand 4']
    #allocation11 [shape = 'u8[4096]{0}', space=vmem, size = 0x1000, scoped, tag = 'input window, operand 5']
    #allocation12 [shape = 's32[2]{0}', space=sflag, size = 0x8, scoped, tag = 'scoped memory for tpu_custom_call.1']
    #allocation13 [shape = 'u8[8192]{0}', space=vmem, size = 0x2000, scoped, tag = 'output window, operand 0']
    #allocation14 [shape = 'u8[8192]{0}', space=vmem, size = 0x2000, scoped, tag = 'output window, operand 1']
    #allocation15 [shape = 's32[2]{0}', space=sflag, size = 0x8, scoped, tag = 'scoped memory for tpu_custom_call.1']
    %13 = vsyncpa [#allocation3], 0
    %s14 = scalar_lea.sflag [#allocation3], 1
    %15 = vsyncpa %s14, 0
    %16 = vsyncpa [#allocation6], 0
    %s17 = scalar_lea.sflag [#allocation6], 1
    %18 = vsyncpa %s17, 0
    %19 = vsyncpa [#allocation9], 0
    %s20 = scalar_lea.sflag [#allocation9], 1
    %21 = vsyncpa %s20, 0
    %22 = vsyncpa [#allocation12], 0
    %s23 = scalar_lea.sflag [#allocation12], 1
    %24 = vsyncpa %s23, 0
    %25 = vsyncpa [#allocation4], 0
    %s26 = scalar_lea.sflag [#allocation4], 1
    %27 = vsyncpa %s26, 0
    %28 = vsyncpa [#allocation15], 0
    %s29 = scalar_lea.sflag [#allocation15], 1
    %30 = vsyncpa %s29, 0
    loop: start=0, step=1, limit=4
    $region2: #{tpu_custom_call.1} parent=1 // loop_pre_header
      _
    $region3: #{tpu_custom_call.1} parent=1 // loop_header
      %s32 = sphi 0, %s36
      %p33 = scmp.ge.s32.totalorder %s32, 4
      %s39 = sphi 0, %s51
      %s40 = sphi 0, %s47
      %s41 = sphi 0, %s39
      %s42 = sphi 0, %s40
      %s43 = sphi 0, %s41
      %s44 = sphi 0, %s42
      %s56 = sphi 0, %s58
      %s59 = sphi 0, %s56
      %s60 = sphi 0, %s59
      %s76 = sphi 0, %s60
      %s84 = sphi 0, %s86
      %s87 = sphi 0, %s84
      %s88 = sphi 0, %s87
      %s104 = sphi 0, %s88
      %s110 = sphi 0, %s112
      %s113 = sphi 0, %s110
      %s114 = sphi 0, %s113
      %s130 = sphi 0, %s114
      %s136 = sphi 0, %s138
      %s139 = sphi 0, %s136
      %s140 = sphi 0, %s139
      %s156 = sphi 0, %s140
      %s162 = sphi 0, %s164
      %s165 = sphi 0, %s162
      %s166 = sphi 0, %s165
      %s182 = sphi 0, %s166
      %s188 = sphi 0, %s190
      %s191 = sphi 0, %s188
      %s192 = sphi 0, %s191
      %s208 = sphi 0, %s192
      %s216 = sphi 0, %s218
      %s219 = sphi 0, %s216
      %s220 = sphi 0, %s219
      %s236 = sphi 0, %s220
      %s244 = sphi 0, %s246
      %s247 = sphi 0, %s244
      %s248 = sphi 0, %s247
      %s264 = sphi 0, %s248
    $region4: #{tpu_custom_call.1} parent=1 // loop_header_branch
      %35 = sbr.rel (%p33) target = $region8
    $region5: #{tpu_custom_call.1} parent=1 // loop_body
      %s37 = ssub.s32 %s32, 1
      %s38 = ssub.s32 %s32, 2
      %s45 = sadd.s32 1, %s40
      %p46 = scmp.ge.s32.totalorder %s45, 2
      %s47 = scalar_select %p46, 0, %s45
      %s48 = sadd.s32 1, %s39
      %s49 = scalar_select %p46, %s48, %s39
      %p50 = scmp.ge.s32.totalorder %s49, 1
      %s51 = scalar_select %p50, 0, %s49
      %s52 = ssub.s32 %s39, %s51
      %s53 = ssub.s32 %s40, %s47
      %s54 = sor.u32 %s52, %s53
      %p55 = scmp.eq.s32.totalorder %s54, 0
      %s57 = sadd.s32 %s56, 1
      %s58 = scalar_select %p55, %s56, %s57
      %p61 = pneg %p55
      %p62 = scmp.eq.s32.totalorder %s32, 1
      %p63 = por %p61, %p62
      %p64 = scmp.ne.s32.totalorder %s56, %s59
      %p65 = scmp.eq.s32.totalorder %s32, 0
      %p66 = por %p64, %p65
      %p67 = scmp.ne.s32.totalorder %s56, %s59
      %p68 = scmp.eq.s32.totalorder %s37, 1
      %p69 = por %p67, %p68
      %p70 = scmp.ne.s32.totalorder %s59, %s60
      %p71 = scmp.eq.s32.totalorder %s37, 0
      %p72 = por %p70, %p71
      %p73 = scmp.ne.s32.totalorder %s59, %s60
      %p74 = scmp.eq.s32.totalorder %s38, 1
      %p75 = por %p73, %p74
      %p77 = scmp.ne.s32.totalorder %s60, %s76
      %p78 = scmp.eq.s32.totalorder %s38, 0
      %p79 = por %p77, %p78
      %s80 = ssub.s32 %s39, %s51
      %s81 = ssub.s32 %s40, %s47
      %s82 = sor.u32 %s80, %s81
      %p83 = scmp.eq.s32.totalorder %s82, 0
      %s85 = sadd.s32 %s84, 1
      %s86 = scalar_select %p83, %s84, %s85
      %p89 = pneg %p83
      %p90 = scmp.eq.s32.totalorder %s32, 1
      %p91 = por %p89, %p90
      %p92 = scmp.ne.s32.totalorder %s84, %s87
      %p93 = scmp.eq.s32.totalorder %s32, 0
      %p94 = por %p92, %p93
      %p95 = scmp.ne.s32.totalorder %s84, %s87
      %p96 = scmp.eq.s32.totalorder %s37, 1
      %p97 = por %p95, %p96
      %p98 = scmp.ne.s32.totalorder %s87, %s88
      %p99 = scmp.eq.s32.totalorder %s37, 0
      %p100 = por %p98, %p99
      %p101 = scmp.ne.s32.totalorder %s87, %s88
      %p102 = scmp.eq.s32.totalorder %s38, 1
      %p103 = por %p101, %p102
      %p105 = scmp.ne.s32.totalorder %s88, %s104
      %p106 = scmp.eq.s32.totalorder %s38, 0
      %p107 = por %p105, %p106
      %s108 = ssub.s32 %s40, %s47
      %p109 = scmp.eq.s32.totalorder %s108, 0
      %s111 = sadd.s32 %s110, 1
      %s112 = scalar_select %p109, %s110, %s111
      %p115 = pneg %p109
      %p116 = scmp.eq.s32.totalorder %s32, 1
      %p117 = por %p115, %p116
      %p118 = scmp.ne.s32.totalorder %s110, %s113
      %p119 = scmp.eq.s32.totalorder %s32, 0
      %p120 = por %p118, %p119
      %p121 = scmp.ne.s32.totalorder %s110, %s113
      %p122 = scmp.eq.s32.totalorder %s37, 1
      %p123 = por %p121, %p122
      %p124 = scmp.ne.s32.totalorder %s113, %s114
      %p125 = scmp.eq.s32.totalorder %s37, 0
      %p126 = por %p124, %p125
      %p127 = scmp.ne.s32.totalorder %s113, %s114
      %p128 = scmp.eq.s32.totalorder %s38, 1
      %p129 = por %p127, %p128
      %p131 = scmp.ne.s32.totalorder %s114, %s130
      %p132 = scmp.eq.s32.totalorder %s38, 0
      %p133 = por %p131, %p132
      %s134 = ssub.s32 %s40, %s47
      %p135 = scmp.eq.s32.totalorder %s134, 0
      %s137 = sadd.s32 %s136, 1
      %s138 = scalar_select %p135, %s136, %s137
      %p141 = pneg %p135
      %p142 = scmp.eq.s32.totalorder %s32, 1
      %p143 = por %p141, %p142
      %p144 = scmp.ne.s32.totalorder %s136, %s139
      %p145 = scmp.eq.s32.totalorder %s32, 0
      %p146 = por %p144, %p145
      %p147 = scmp.ne.s32.totalorder %s136, %s139
      %p148 = scmp.eq.s32.totalorder %s37, 1
      %p149 = por %p147, %p148
      %p150 = scmp.ne.s32.totalorder %s139, %s140
      %p151 = scmp.eq.s32.totalorder %s37, 0
      %p152 = por %p150, %p151
      %p153 = scmp.ne.s32.totalorder %s139, %s140
      %p154 = scmp.eq.s32.totalorder %s38, 1
      %p155 = por %p153, %p154
      %p157 = scmp.ne.s32.totalorder %s140, %s156
      %p158 = scmp.eq.s32.totalorder %s38, 0
      %p159 = por %p157, %p158
      %s160 = ssub.s32 %s40, %s47
      %p161 = scmp.eq.s32.totalorder %s160, 0
      %s163 = sadd.s32 %s162, 1
      %s164 = scalar_select %p161, %s162, %s163
      %p167 = pneg %p161
      %p168 = scmp.eq.s32.totalorder %s32, 1
      %p169 = por %p167, %p168
      %p170 = scmp.ne.s32.totalorder %s162, %s165
      %p171 = scmp.eq.s32.totalorder %s32, 0
      %p172 = por %p170, %p171
      %p173 = scmp.ne.s32.totalorder %s162, %s165
      %p174 = scmp.eq.s32.totalorder %s37, 1
      %p175 = por %p173, %p174
      %p176 = scmp.ne.s32.totalorder %s165, %s166
      %p177 = scmp.eq.s32.totalorder %s37, 0
      %p178 = por %p176, %p177
      %p179 = scmp.ne.s32.totalorder %s165, %s166
      %p180 = scmp.eq.s32.totalorder %s38, 1
      %p181 = por %p179, %p180
      %p183 = scmp.ne.s32.totalorder %s166, %s182
      %p184 = scmp.eq.s32.totalorder %s38, 0
      %p185 = por %p183, %p184
      %s186 = ssub.s32 %s40, %s47
      %p187 = scmp.eq.s32.totalorder %s186, 0
      %s189 = sadd.s32 %s188, 1
      %s190 = scalar_select %p187, %s188, %s189
      %p193 = pneg %p187
      %p194 = scmp.eq.s32.totalorder %s32, 1
      %p195 = por %p193, %p194
      %p196 = scmp.ne.s32.totalorder %s188, %s191
      %p197 = scmp.eq.s32.totalorder %s32, 0
      %p198 = por %p196, %p197
      %p199 = scmp.ne.s32.totalorder %s188, %s191
      %p200 = scmp.eq.s32.totalorder %s37, 1
      %p201 = por %p199, %p200
      %p202 = scmp.ne.s32.totalorder %s191, %s192
      %p203 = scmp.eq.s32.totalorder %s37, 0
      %p204 = por %p202, %p203
      %p205 = scmp.ne.s32.totalorder %s191, %s192
      %p206 = scmp.eq.s32.totalorder %s38, 1
      %p207 = por %p205, %p206
      %p209 = scmp.ne.s32.totalorder %s192, %s208
      %p210 = scmp.eq.s32.totalorder %s38, 0
      %p211 = por %p209, %p210
      %s212 = ssub.s32 %s39, %s51
      %s213 = ssub.s32 %s40, %s47
      %s214 = sor.u32 %s212, %s213
      %p215 = scmp.eq.s32.totalorder %s214, 0
      %s217 = sadd.s32 %s216, 1
      %s218 = scalar_select %p215, %s216, %s217
      %p221 = pneg %p215
      %p222 = scmp.eq.s32.totalorder %s32, 1
      %p223 = por %p221, %p222
      %p224 = scmp.ne.s32.totalorder %s216, %s219
      %p225 = scmp.eq.s32.totalorder %s32, 0
      %p226 = por %p224, %p225
      %p227 = scmp.ne.s32.totalorder %s216, %s219
      %p228 = scmp.eq.s32.totalorder %s37, 1
      %p229 = por %p227, %p228
      %p230 = scmp.ne.s32.totalorder %s219, %s220
      %p231 = scmp.eq.s32.totalorder %s37, 0
      %p232 = por %p230, %p231
      %p233 = scmp.ne.s32.totalorder %s219, %s220
      %p234 = scmp.eq.s32.totalorder %s38, 1
      %p235 = por %p233, %p234
      %p237 = scmp.ne.s32.totalorder %s220, %s236
      %p238 = scmp.eq.s32.totalorder %s38, 0
      %p239 = por %p237, %p238
      %s240 = ssub.s32 %s39, %s51
      %s241 = ssub.s32 %s40, %s47
      %s242 = sor.u32 %s240, %s241
      %p243 = scmp.eq.s32.totalorder %s242, 0
      %s245 = sadd.s32 %s244, 1
      %s246 = scalar_select %p243, %s244, %s245
      %p249 = pneg %p243
      %p250 = scmp.eq.s32.totalorder %s32, 1
      %p251 = por %p249, %p250
      %p252 = scmp.ne.s32.totalorder %s244, %s247
      %p253 = scmp.eq.s32.totalorder %s32, 0
      %p254 = por %p252, %p253
      %p255 = scmp.ne.s32.totalorder %s244, %s247
      %p256 = scmp.eq.s32.totalorder %s37, 1
      %p257 = por %p255, %p256
      %p258 = scmp.ne.s32.totalorder %s247, %s248
      %p259 = scmp.eq.s32.totalorder %s37, 0
      %p260 = por %p258, %p259
      %p261 = scmp.ne.s32.totalorder %s247, %s248
      %p262 = scmp.eq.s32.totalorder %s38, 1
      %p263 = por %p261, %p262
      %p265 = scmp.ne.s32.totalorder %s248, %s264
      %p266 = scmp.eq.s32.totalorder %s38, 0
      %p267 = por %p265, %p266
      %p268 = scmp.le.s32.totalorder 1, %s32
      %p269 = scmp.lt.s32.totalorder %s32, 3
      %p270 = pnand %p268, %p269
      %p271 = pneg %p270
      // Predicated region
      $region9: #{tpu_custom_call.1} parent=5 // pred_check
        _
      $region10: #{tpu_custom_call.1} parent=5 // pred_check_branch
        %273 = sbr.rel (%p270) target = $region12
      $region11: #{tpu_custom_call.1} parent=5 // pred_region
        %s274 = ssub.s32 %s32, 1
      $region12: #{tpu_custom_call.1} parent=5 // pred_fallthru
        _
      %p275 = scmp.lt.s32.totalorder %s32, 2
      // Predicated region
      $region13: #{tpu_custom_call.1} parent=5 // pred_check
        %p276 = pneg %p275
      $region14: #{tpu_custom_call.1} parent=5 // pred_check_branch
        %278 = sbr.rel (%p276) target = $region16
      $region15: #{tpu_custom_call.1} parent=5 // pred_region
        // Predicated region
        $region17: #{tpu_custom_call.1} parent=15 // pred_check
          %p279 = pneg %p66
        $region18: #{tpu_custom_call.1} parent=15 // pred_check_branch
          %281 = sbr.rel (%p279) target = $region20
        $region19: #{tpu_custom_call.1} parent=15 // pred_region
          %s282 = sand.u32 %s56, 1
          %s283 = scalar_lea.sflag [#allocation3], %s282
          %s284 = sand.u32 %s56, 1
          %s285 = smul.addr %s284, 8
          %s286 = scalar_lea.vmem [#allocation2], %s285
          %s287 = smul.u32 4, %s40
          %289 = vsyncadd %s283, 0
          %s290 = smul.addr %s39, 8
          %s291 = sadd.s32 %s287, %s290
          %s292 = smul.addr %s291, 2
          %s293 = scalar_lea.hbm %s0, %s292
          %s295 = sshll.u32 %s293, 4
          %s296 = int_to_ptr.hbm [resolvable:$true] %s295
          %s297 = sshll.u32 %s286, 4
          %s298 = int_to_ptr.vmem [resolvable:$true] %s297
          %300 = dma.hbm_to_vmem [thread:$0]  %s296, 128, %s298, %s283
        $region20: #{tpu_custom_call.1} parent=15 // pred_fallthru
          _
        // Predicated region
        $region21: #{tpu_custom_call.1} parent=15 // pred_check
          %p301 = pneg %p94
        $region22: #{tpu_custom_call.1} parent=15 // pred_check_branch
          %303 = sbr.rel (%p301) target = $region24
        $region23: #{tpu_custom_call.1} parent=15 // pred_region
          %s304 = sand.u32 %s32, 1
          %s305 = scalar_lea.sflag [#allocation6], %s304
          %s306 = sand.u32 %s84, 1
          %s307 = smul.addr %s306, 8
          %s308 = scalar_lea.vmem [#allocation5], %s307
          %s309 = smul.u32 4, %s40
          %311 = vsyncadd %s305, 0
          %s312 = smul.addr %s39, 8
          %s313 = sadd.s32 %s309, %s312
          %s314 = smul.addr %s313, 2
          %s315 = scalar_lea.hbm %s1, %s314
          %s317 = sshll.u32 %s315, 4
          %s318 = int_to_ptr.hbm [resolvable:$true] %s317
          %s319 = sshll.u32 %s308, 4
          %s320 = int_to_ptr.vmem [resolvable:$true] %s319
          %322 = dma.hbm_to_vmem [thread:$0]  %s318, 128, %s320, %s305
        $region24: #{tpu_custom_call.1} parent=15 // pred_fallthru
          _
        // Predicated region
        $region25: #{tpu_custom_call.1} parent=15 // pred_check
          %p323 = pneg %p120
        $region26: #{tpu_custom_call.1} parent=15 // pred_check_branch
          %325 = sbr.rel (%p323) target = $region28
        $region27: #{tpu_custom_call.1} parent=15 // pred_region
          %s326 = sand.u32 %s32, 1
          %s327 = scalar_lea.sflag [#allocation6], %s326
          %s328 = sand.u32 %s110, 1
          %s329 = smul.addr %s328, 4
          %s330 = scalar_lea.vmem [#allocation7], %s329
          %s331 = smul.u32 4, %s40
          %333 = vsyncadd %s327, 0
          %s334 = scalar_lea.hbm %s2, %s331
          %s336 = sshll.u32 %s334, 4
          %s337 = int_to_ptr.hbm [resolvable:$true] %s336
          %s338 = sshll.u32 %s330, 4
          %s339 = int_to_ptr.vmem [resolvable:$true] %s338
          %341 = dma.hbm_to_vmem [thread:$0]  %s337, 64, %s339, %s327
        $region28: #{tpu_custom_call.1} parent=15 // pred_fallthru
          _
        // Predicated region
        $region29: #{tpu_custom_call.1} parent=15 // pred_check
          %p342 = pneg %p146
        $region30: #{tpu_custom_call.1} parent=15 // pred_check_branch
          %344 = sbr.rel (%p342) target = $region32
        $region31: #{tpu_custom_call.1} parent=15 // pred_region
          %s345 = sand.u32 %s32, 1
          %s346 = scalar_lea.sflag [#allocation9], %s345
          %s347 = sand.u32 %s136, 1
          %s348 = smul.addr %s347, 4
          %s349 = scalar_lea.vmem [#allocation8], %s348
          %s350 = smul.u32 4, %s40
          %352 = vsyncadd %s346, 0
          %s353 = scalar_lea.hbm %s3, %s350
          %s355 = sshll.u32 %s353, 4
          %s356 = int_to_ptr.hbm [resolvable:$true] %s355
          %s357 = sshll.u32 %s349, 4
          %s358 = int_to_ptr.vmem [resolvable:$true] %s357
          %360 = dma.hbm_to_vmem [thread:$0]  %s356, 64, %s358, %s346
        $region32: #{tpu_custom_call.1} parent=15 // pred_fallthru
          _
        // Predicated region
        $region33: #{tpu_custom_call.1} parent=15 // pred_check
          %p361 = pneg %p172
        $region34: #{tpu_custom_call.1} parent=15 // pred_check_branch
          %363 = sbr.rel (%p361) target = $region36
        $region35: #{tpu_custom_call.1} parent=15 // pred_region
          %s364 = sand.u32 %s32, 1
          %s365 = scalar_lea.sflag [#allocation9], %s364
          %s366 = sand.u32 %s162, 1
          %s367 = smul.addr %s366, 4
          %s368 = scalar_lea.vmem [#allocation10], %s367
          %s369 = smul.u32 4, %s40
          %371 = vsyncadd %s365, 0
          %s372 = scalar_lea.hbm %s4, %s369
          %s374 = sshll.u32 %s372, 4
          %s375 = int_to_ptr.hbm [resolvable:$true] %s374
          %s376 = sshll.u32 %s368, 4
          %s377 = int_to_ptr.vmem [resolvable:$true] %s376
          %379 = dma.hbm_to_vmem [thread:$0]  %s375, 64, %s377, %s365
        $region36: #{tpu_custom_call.1} parent=15 // pred_fallthru
          _
        // Predicated region
        $region37: #{tpu_custom_call.1} parent=15 // pred_check
          %p380 = pneg %p198
        $region38: #{tpu_custom_call.1} parent=15 // pred_check_branch
          %382 = sbr.rel (%p380) target = $region40
        $region39: #{tpu_custom_call.1} parent=15 // pred_region
          %s383 = sand.u32 %s188, 1
          %s384 = scalar_lea.sflag [#allocation12], %s383
          %s385 = sand.u32 %s188, 1
          %s386 = smul.addr %s385, 4
          %s387 = scalar_lea.vmem [#allocation11], %s386
          %s388 = smul.u32 4, %s40
          %390 = vsyncadd %s384, 0
          %s391 = scalar_lea.hbm %s5, %s388
          %s393 = sshll.u32 %s391, 4
          %s394 = int_to_ptr.hbm [resolvable:$true] %s393
          %s395 = sshll.u32 %s387, 4
          %s396 = int_to_ptr.vmem [resolvable:$true] %s395
          %398 = dma.hbm_to_vmem [thread:$0]  %s394, 64, %s396, %s384
        $region40: #{tpu_custom_call.1} parent=15 // pred_fallthru
          _
      $region16: #{tpu_custom_call.1} parent=5 // pred_fallthru
        _
      %p399 = scmp.le.s32.totalorder 1, %s32
      %p400 = scmp.lt.s32.totalorder %s32, 3
      %p401 = pnand %p399, %p400
      %p402 = pneg %p401
      // Predicated region
      $region41: #{tpu_custom_call.1} parent=5 // pred_check
        _
      $region42: #{tpu_custom_call.1} parent=5 // pred_check_branch
        %404 = sbr.rel (%p401) target = $region44
      $region43: #{tpu_custom_call.1} parent=5 // pred_region
        %s405 = ssub.s32 %s32, 1
        %s406 = sand.u32 %s59, 1
        %s407 = scalar_lea.sflag [#allocation3], %s406
        %s408 = sand.u32 %s59, 1
        %s409 = smul.addr %s408, 8
        %s410 = scalar_lea.vmem [#allocation2], %s409
        // Predicated region
        $region45: #{tpu_custom_call.1} parent=43 // pred_check
          %p411 = pneg %p72
        $region46: #{tpu_custom_call.1} parent=43 // pred_check_branch
          %413 = sbr.rel (%p411) target = $region48
        $region47: #{tpu_custom_call.1} parent=43 // pred_region
          %415 = dma.done %s407, 128
        $region48: #{tpu_custom_call.1} parent=43 // pred_fallthru
          _
        %s416 = sand.u32 %s37, 1
        %s417 = scalar_lea.sflag [#allocation6], %s416
        %s418 = sand.u32 %s87, 1
        %s419 = smul.addr %s418, 8
        %s420 = scalar_lea.vmem [#allocation5], %s419
        // Predicated region
        $region49: #{tpu_custom_call.1} parent=43 // pred_check
          %p421 = pneg %p100
        $region50: #{tpu_custom_call.1} parent=43 // pred_check_branch
          %423 = sbr.rel (%p421) target = $region52
        $region51: #{tpu_custom_call.1} parent=43 // pred_region
          %425 = dma.done %s417, 128
        $region52: #{tpu_custom_call.1} parent=43 // pred_fallthru
          _
        %s426 = sand.u32 %s37, 1
        %s427 = scalar_lea.sflag [#allocation6], %s426
        %s428 = sand.u32 %s113, 1
        %s429 = smul.addr %s428, 4
        %s430 = scalar_lea.vmem [#allocation7], %s429
        // Predicated region
        $region53: #{tpu_custom_call.1} parent=43 // pred_check
          %p431 = pneg %p126
        $region54: #{tpu_custom_call.1} parent=43 // pred_check_branch
          %433 = sbr.rel (%p431) target = $region56
        $region55: #{tpu_custom_call.1} parent=43 // pred_region
          %435 = dma.done %s427, 64
        $region56: #{tpu_custom_call.1} parent=43 // pred_fallthru
          _
        %s436 = sand.u32 %s37, 1
        %s437 = scalar_lea.sflag [#allocation9], %s436
        %s438 = sand.u32 %s139, 1
        %s439 = smul.addr %s438, 4
        %s440 = scalar_lea.vmem [#allocation8], %s439
        // Predicated region
        $region57: #{tpu_custom_call.1} parent=43 // pred_check
          %p441 = pneg %p152
        $region58: #{tpu_custom_call.1} parent=43 // pred_check_branch
          %443 = sbr.rel (%p441) target = $region60
        $region59: #{tpu_custom_call.1} parent=43 // pred_region
          %445 = dma.done %s437, 64
        $region60: #{tpu_custom_call.1} parent=43 // pred_fallthru
          _
        %s446 = sand.u32 %s37, 1
        %s447 = scalar_lea.sflag [#allocation9], %s446
        %s448 = sand.u32 %s165, 1
        %s449 = smul.addr %s448, 4
        %s450 = scalar_lea.vmem [#allocation10], %s449
        // Predicated region
        $region61: #{tpu_custom_call.1} parent=43 // pred_check
          %p451 = pneg %p178
        $region62: #{tpu_custom_call.1} parent=43 // pred_check_branch
          %453 = sbr.rel (%p451) target = $region64
        $region63: #{tpu_custom_call.1} parent=43 // pred_region
          %455 = dma.done %s447, 64
        $region64: #{tpu_custom_call.1} parent=43 // pred_fallthru
          _
        %s456 = sand.u32 %s191, 1
        %s457 = scalar_lea.sflag [#allocation12], %s456
        %s458 = sand.u32 %s191, 1
        %s459 = smul.addr %s458, 4
        %s460 = scalar_lea.vmem [#allocation11], %s459
        // Predicated region
        $region65: #{tpu_custom_call.1} parent=43 // pred_check
          %p461 = pneg %p204
        $region66: #{tpu_custom_call.1} parent=43 // pred_check_branch
          %463 = sbr.rel (%p461) target = $region68
        $region67: #{tpu_custom_call.1} parent=43 // pred_region
          %465 = dma.done %s457, 64
        $region68: #{tpu_custom_call.1} parent=43 // pred_fallthru
          _
        %s466 = sand.u32 %s59, 1
        %s467 = scalar_lea.sflag [#allocation3], %s466
        %s468 = sand.u32 %s59, 1
        %s469 = smul.addr %s468, 8
        %s470 = scalar_lea.vmem [#allocation2], %s469
        %p471 = pneg %p72
        %p472 = pneg %p69
        %s473 = sand.u32 %s37, 1
        %s474 = scalar_lea.sflag [#allocation6], %s473
        %s475 = sand.u32 %s87, 1
        %s476 = smul.addr %s475, 8
        %s477 = scalar_lea.vmem [#allocation5], %s476
        %p478 = pneg %p100
        %p479 = pneg %p97
        %s480 = sand.u32 %s37, 1
        %s481 = scalar_lea.sflag [#allocation6], %s480
        %s482 = sand.u32 %s113, 1
        %s483 = smul.addr %s482, 4
        %s484 = scalar_lea.vmem [#allocation7], %s483
        %p485 = pneg %p126
        %p486 = pneg %p123
        %s487 = sand.u32 %s37, 1
        %s488 = scalar_lea.sflag [#allocation9], %s487
        %s489 = sand.u32 %s139, 1
        %s490 = smul.addr %s489, 4
        %s491 = scalar_lea.vmem [#allocation8], %s490
        %p492 = pneg %p152
        %p493 = pneg %p149
        %s494 = sand.u32 %s37, 1
        %s495 = scalar_lea.sflag [#allocation9], %s494
        %s496 = sand.u32 %s165, 1
        %s497 = smul.addr %s496, 4
        %s498 = scalar_lea.vmem [#allocation10], %s497
        %p499 = pneg %p178
        %p500 = pneg %p175
        %s501 = sand.u32 %s191, 1
        %s502 = scalar_lea.sflag [#allocation12], %s501
        %s503 = sand.u32 %s191, 1
        %s504 = smul.addr %s503, 4
        %s505 = scalar_lea.vmem [#allocation11], %s504
        %p506 = pneg %p204
        %p507 = pneg %p201
        %p508 = pneg %p232
        %p509 = pneg %p229
        %s510 = sand.u32 %s219, 1
        %s511 = scalar_lea.sflag [#allocation4], %s510
        %s512 = sand.u32 %s219, 1
        %s513 = smul.addr %s512, 8
        %s514 = scalar_lea.vmem [#allocation13], %s513
        %p515 = pneg %p260
        %p516 = pneg %p257
        %s517 = sand.u32 %s247, 1
        %s518 = scalar_lea.sflag [#allocation15], %s517
        %s519 = sand.u32 %s247, 1
        %s520 = smul.addr %s519, 8
        %s521 = scalar_lea.vmem [#allocation14], %s520
        %s522 = smul.u32 4, %s42
        %s523 = smul.u32 4, %s42
        %s524 = smul.u32 4, %s42
        %s525 = smul.u32 4, %s42
        %s526 = smul.u32 4, %s42
        %s527 = smul.u32 4, %s42
        %s528 = smul.u32 4, %s42
        %s529 = smul.u32 4, %s42
        %v530 = vld [vmem:[%s410] sm:$0xff]
        %v531 = vld [vmem:[%s420] sm:$0xff]
        %v532 = vld [vmem:[%s430] sm:$0xf]
        %v534 = vperm.slane %v532, 0
        %v535 = vperm.slane %v532, 1
        %v536 = vperm.slane %v532, 2
        %v537 = vperm.slane %v532, 3
        %v538 = vrot.slane %v535, 6
        %v539 = vrot.slane %v536, 4
        %v540 = vrot.slane %v537, 2
        %vm541 = vcmask 1041408
        %v542 = vsel %vm541, %v534, %v538
        %vm543 = vcmask 1045508
        %v544 = vsel %vm543, %v539, %v540
        %vm545 = vcmask 1043456
        %v546 = vsel %vm545, %v542, %v544
        %v548 = vmul.f32 %v530, %v546
        %v549 = vld [vmem:[%s440] sm:$0xf]
        %v551 = vperm.slane %v549, 0
        %v552 = vperm.slane %v549, 1
        %v553 = vperm.slane %v549, 2
        %v554 = vperm.slane %v549, 3
        %v555 = vrot.slane %v552, 6
        %v556 = vrot.slane %v553, 4
        %v557 = vrot.slane %v554, 2
        %v558 = vsel %vm541, %v551, %v555
        %v559 = vsel %vm543, %v556, %v557
        %v560 = vsel %vm545, %v558, %v559
        %v562 = vadd.f32 %v548, %v560
        %563 = vst [vmem:[%s514] sm:$0xff] %v562
        %v564 = vld [vmem:[%s450] sm:$0xf]
        %v566 = vperm.slane %v564, 0
        %v567 = vperm.slane %v564, 1
        %v568 = vperm.slane %v564, 2
        %v569 = vperm.slane %v564, 3
        %v570 = vrot.slane %v567, 6
        %v571 = vrot.slane %v568, 4
        %v572 = vrot.slane %v569, 2
        %v573 = vsel %vm541, %v566, %v570
        %v574 = vsel %vm543, %v571, %v572
        %v575 = vsel %vm545, %v573, %v574
        %v577 = vmul.f32 %v531, %v575
        %v578 = vld [vmem:[%s460] sm:$0xf]
        %v580 = vperm.slane %v578, 0
        %v581 = vperm.slane %v578, 1
        %v582 = vperm.slane %v578, 2
        %v583 = vperm.slane %v578, 3
        %v584 = vrot.slane %v581, 6
        %v585 = vrot.slane %v582, 4
        %v586 = vrot.slane %v583, 2
        %v587 = vsel %vm541, %v580, %v584
        %v588 = vsel %vm543, %v585, %v586
        %v589 = vsel %vm545, %v587, %v588
        %v591 = vadd.f32 %v577, %v589
        %592 = vst [vmem:[%s521] sm:$0xff] %v591
        %s593 = sand.u32 %s219, 1
        %s594 = scalar_lea.sflag [#allocation4], %s593
        %s595 = sand.u32 %s219, 1
        %s596 = smul.addr %s595, 8
        %s597 = scalar_lea.vmem [#allocation13], %s596
        %s598 = sand.u32 %s247, 1
        %s599 = scalar_lea.sflag [#allocation15], %s598
        %s600 = sand.u32 %s247, 1
        %s601 = smul.addr %s600, 8
        %s602 = scalar_lea.vmem [#allocation14], %s601
        // Predicated region
        $region69: #{tpu_custom_call.1} parent=43 // pred_check
          %p603 = pneg %p229
        $region70: #{tpu_custom_call.1} parent=43 // pred_check_branch
          %605 = sbr.rel (%p603) target = $region72
        $region71: #{tpu_custom_call.1} parent=43 // pred_region
          %s606 = smul.u32 4, %s42
          %608 = vsyncadd %s594, 0
          %s609 = smul.addr %s41, 8
          %s610 = sadd.s32 %s606, %s609
          %s611 = smul.addr %s610, 2
          %s612 = scalar_lea.hbm %s6, %s611
          %s614 = sshll.u32 %s597, 4
          %s615 = int_to_ptr.vmem [resolvable:$true] %s614
          %s616 = sshll.u32 %s612, 4
          %s617 = int_to_ptr.hbm [resolvable:$true] %s616
          %619 = dma.vmem_to_hbm [thread:$0]  %s615, 128, %s617, %s594
        $region72: #{tpu_custom_call.1} parent=43 // pred_fallthru
          _
        // Predicated region
        $region73: #{tpu_custom_call.1} parent=43 // pred_check
          %p620 = pneg %p257
        $region74: #{tpu_custom_call.1} parent=43 // pred_check_branch
          %622 = sbr.rel (%p620) target = $region76
        $region75: #{tpu_custom_call.1} parent=43 // pred_region
          %s623 = smul.u32 4, %s42
          %625 = vsyncadd %s599, 0
          %s626 = smul.addr %s41, 8
          %s627 = sadd.s32 %s623, %s626
          %s628 = smul.addr %s627, 2
          %s629 = scalar_lea.hbm %s7, %s628
          %s631 = sshll.u32 %s602, 4
          %s632 = int_to_ptr.vmem [resolvable:$true] %s631
          %s633 = sshll.u32 %s629, 4
          %s634 = int_to_ptr.hbm [resolvable:$true] %s633
          %636 = dma.vmem_to_hbm [thread:$0]  %s632, 128, %s634, %s599
        $region76: #{tpu_custom_call.1} parent=43 // pred_fallthru
          _
      $region44: #{tpu_custom_call.1} parent=5 // pred_fallthru
        _
      %p637 = scmp.le.s32.totalorder 2, %s32
      // Predicated region
      $region77: #{tpu_custom_call.1} parent=5 // pred_check
        %p638 = pneg %p637
      $region78: #{tpu_custom_call.1} parent=5 // pred_check_branch
        %640 = sbr.rel (%p638) target = $region80
      $region79: #{tpu_custom_call.1} parent=5 // pred_region
        %s641 = ssub.s32 %s32, 2
        // Predicated region
        $region81: #{tpu_custom_call.1} parent=79 // pred_check
          %p642 = pneg %p235
        $region82: #{tpu_custom_call.1} parent=79 // pred_check_branch
          %644 = sbr.rel (%p642) target = $region84
        $region83: #{tpu_custom_call.1} parent=79 // pred_region
          %s645 = sand.u32 %s220, 1
          %s646 = scalar_lea.sflag [#allocation4], %s645
          %s647 = sand.u32 %s220, 1
          %s648 = smul.addr %s647, 8
          %s649 = scalar_lea.vmem [#allocation13], %s648
          %651 = dma.done %s646, 128
        $region84: #{tpu_custom_call.1} parent=79 // pred_fallthru
          _
        // Predicated region
        $region85: #{tpu_custom_call.1} parent=79 // pred_check
          %p652 = pneg %p263
        $region86: #{tpu_custom_call.1} parent=79 // pred_check_branch
          %654 = sbr.rel (%p652) target = $region88
        $region87: #{tpu_custom_call.1} parent=79 // pred_region
          %s655 = sand.u32 %s248, 1
          %s656 = scalar_lea.sflag [#allocation15], %s655
          %s657 = sand.u32 %s248, 1
          %s658 = smul.addr %s657, 8
          %s659 = scalar_lea.vmem [#allocation14], %s658
          %661 = dma.done %s656, 128
        $region88: #{tpu_custom_call.1} parent=79 // pred_fallthru
          _
      $region80: #{tpu_custom_call.1} parent=5 // pred_fallthru
        _
    $region6: #{tpu_custom_call.1} parent=1 // loop_footer
      %s36 = sadd.s32 1, %s32
    $region7: #{tpu_custom_call.1} parent=1 // loop_footer_branch
      %31 = sbr.rel target = $region3
    $region8: #{tpu_custom_call.1} parent=1 // loop_exit
      _
    %662 = vsyncpa [#allocation3], 1
    %s663 = scalar_lea.sflag [#allocation3], 1
    %664 = vsyncpa %s663, 1
    %665 = vsyncpa [#allocation6], 1
    %s666 = scalar_lea.sflag [#allocation6], 1
    %667 = vsyncpa %s666, 1
    %668 = vsyncpa [#allocation9], 1
    %s669 = scalar_lea.sflag [#allocation9], 1
    %670 = vsyncpa %s669, 1
    %671 = vsyncpa [#allocation12], 1
    %s672 = scalar_lea.sflag [#allocation12], 1
    %673 = vsyncpa %s672, 1
    %674 = vsyncpa [#allocation4], 1
    %s675 = scalar_lea.sflag [#allocation4], 1
    %676 = vsyncpa %s675, 1
    %677 = vsyncpa [#allocation15], 1
    %s678 = scalar_lea.sflag [#allocation15], 1
    %679 = vsyncpa %s678, 1

</llo_original>
